<compile_context>
chip_gen: v7x
topology: tpu7x:2x2x1
jax: 0.10.0
libtpu: 0.0.40
codegen_flags: <defaults>
</compile_context>

<pallas_src>
import numpy as np
import jax
import jax.numpy as jnp
from jax.experimental import pallas as pl
from jax.experimental.pallas import tpu as pltpu


def _make_fused_kernel(n, cin, cmid, cout, k, h, w):
    p = k - 1
    oh1, ow1 = h + p, w + p          # 17, 17
    oh2, ow2 = oh1 + p, ow1 + p      # 18, 18

    def kernel(xpad_ref, w1_ref, b1_ref, w2_ref, b2_ref, out_ref):
        # xpad_ref: (n, cin, h+2p, w+2p)    zero-padded input (padding done in XLA)
        # w1_ref  : (cin*k*k, 1, cmid*ow1)  flipped, lane-folded per-tap weights
        # b1_ref  : (1, cmid*ow1)
        # w2_ref  : (cmid*k*k, 1, cout*ow2)
        # b2_ref  : (1, cout*ow2)
        # out_ref : (n, oh2, cout*ow2)      lane-dense output

        # Hoist every weight/bias row read out of the (fully unrolled) loops:
        # one small vector load per tap, no scalar->vreg broadcasts.
        w1_rows = [w1_ref[t] for t in range(cin * k * k)]
        w2_rows = [w2_ref[t] for t in range(cmid * k * k)]
        b1_row = b1_ref[...]
        b2_row = b2_ref[...]

        zc = jnp.zeros((oh1, 1), jnp.float32)    # zero column for layer-2 shifts
        zr = jnp.zeros((1, ow2), jnp.float32)    # zero row    for layer-2 shifts

        for ni in range(n):                      # whole batch, one grid step
            # ---- layer 1: output channels folded into lanes -> (oh1, cmid*ow1) ----
            acc1 = jnp.zeros((oh1, cmid * ow1), jnp.float32)
            for ci in range(cin):
                for kh in range(k):
                    for kw in range(k):
                        t = (ci * k + kh) * k + kw
                        patch = xpad_ref[ni, ci, kh:kh + oh1, kw:kw + ow1]   # (17,17)
                        acc1 = acc1 + jnp.tile(patch, (1, cmid)) * w1_rows[t]
            acc1 = acc1 + b1_row

            # Split the folded accumulator back into the cmid intermediate channels
            # (stays in vregs; never written to VMEM).
            mids = [acc1[:, ci * ow1:(ci + 1) * ow1] for ci in range(cmid)]

            # ---- layer 2 + tanh: output channels folded into lanes -> (oh2, cout*ow2) ----
            acc2 = jnp.zeros((oh2, cout * ow2), jnp.float32)
            for ci in range(cmid):
                mc = mids[ci]                                         # (17,17)
                cols = [jnp.concatenate([zc, mc], axis=1),            # tap kw == 0
                        jnp.concatenate([mc, zc], axis=1)]            # tap kw == 1
                for kh in range(k):
                    for kw in range(k):
                        t = (ci * k + kh) * k + kw
                        cs = cols[kw]                                 # (17,18)
                        if kh == 0:
                            patch = jnp.concatenate([zr, cs], axis=0)  # (18,18)
                        else:
                            patch = jnp.concatenate([cs, zr], axis=0)
                        acc2 = acc2 + jnp.tile(patch, (1, cout)) * w2_rows[t]

            out_ref[ni] = jnp.tanh(acc2 + b2_row)                     # EUP tanh

    return kernel


def fused_double_conv_transpose_tanh(x, w1, b1, w2, b2):
    """x: (N, 3, H, W) f32; w1: (3, 2, 2, 2) PyTorch IOHW; w2: (2, 5, 2, 2)."""
    n, cin, h, w = x.shape
    cin1, cmid, k, _ = w1.shape
    cmid2, cout, k2, _ = w2.shape
    assert cin == cin1 and cmid == cmid2 and k == k2 == 2  # shift logic assumes k=2

    p = k - 1
    oh1, ow1 = h + p, w + p
    oh2, ow2 = oh1 + p, ow1 + p

    # --- layout plumbing in XLA (tiny one-off ops, outside the kernel) ---
    xpad = jnp.pad(x.astype(jnp.float32), ((0, 0), (0, 0), (p, p), (p, p)))
    w1row = jnp.repeat(
        jnp.transpose(jnp.flip(w1, (2, 3)), (0, 2, 3, 1)).reshape(cin * k * k, cmid),
        ow1, axis=1).reshape(cin * k * k, 1, cmid * ow1).astype(jnp.float32)
    b1row = jnp.repeat(b1, ow1).reshape(1, cmid * ow1).astype(jnp.float32)
    w2row = jnp.repeat(
        jnp.transpose(jnp.flip(w2, (2, 3)), (0, 2, 3, 1)).reshape(cmid * k * k, cout),
        ow2, axis=1).reshape(cmid * k * k, 1, cout * ow2).astype(jnp.float32)
    b2row = jnp.repeat(b2, ow2).reshape(1, cout * ow2).astype(jnp.float32)

    kernel = _make_fused_kernel(n, cin, cmid, cout, k, h, w)

    flops = 2 * n * (cin * cmid * k * k * oh1 * ow1 + cmid * cout * k * k * oh2 * ow2)
    cost = pl.CostEstimate(
        flops=flops,
        transcendentals=n * cout * oh2 * ow2,
        bytes_accessed=4 * (xpad.size + w1row.size + b1row.size + w2row.size
                            + b2row.size + n * oh2 * cout * ow2))

    out_lane = pl.pallas_call(
        kernel,
        out_shape=jax.ShapeDtypeStruct((n, oh2, cout * ow2), jnp.float32),
        in_specs=[pl.BlockSpec(memory_space=pltpu.MemorySpace.VMEM)] * 5,
        out_specs=pl.BlockSpec(memory_space=pltpu.MemorySpace.VMEM),
        cost_estimate=cost,
    )(xpad, w1row, b1row, w2row, b2row)

    # lane-dense kernel output -> NCHW (layout plumbing, done by XLA)
    return out_lane.reshape(n, oh2, cout, ow2).transpose(0, 2, 1, 3)


# ---------------- numpy reference for validation ----------------
def _convt_ref(x_np, w_np, b_np):
    n_, cin_, h_, w_ = x_np.shape
    _, cout_, kk, _ = w_np.shape
    out_np = np.zeros((n_, cout_, h_ + kk - 1, w_ + kk - 1), dtype=np.float32)
    for ni in range(n_):
        for co in range(cout_):
            for ci in range(cin_):
                for ih in range(h_):
                    for iw in range(w_):
                        out_np[ni, co, ih:ih + kk, iw:iw + kk] += (
                            x_np[ni, ci, ih, iw] * w_np[ci, co])
            out_np[ni, co] += b_np[co]
    return out_np


if __name__ == "__main__":
    key = jax.random.PRNGKey(0)
    k_x, k_w1, k_b1, k_w2, k_b2 = jax.random.split(key, 5)

    x = jax.random.normal(k_x, (2, 3, 16, 16), dtype=jnp.float32)

    # conv_transpose_1: ConvTranspose2d(3, 2, kernel_size=2)
    fan1 = 3 * 2 * 2
    w1 = jax.random.uniform(k_w1, (3, 2, 2, 2), jnp.float32,
                            -1.0 / np.sqrt(fan1), 1.0 / np.sqrt(fan1))
    b1 = jax.random.uniform(k_b1, (2,), jnp.float32,
                            -1.0 / np.sqrt(fan1), 1.0 / np.sqrt(fan1))

    # conv_transpose_2: out_channels=5, kernel_size=2 (in_channels = 2 by data flow)
    fan2 = 2 * 2 * 2
    w2 = jax.random.uniform(k_w2, (2, 5, 2, 2), jnp.float32,
                            -1.0 / np.sqrt(fan2), 1.0 / np.sqrt(fan2))
    b2 = jax.random.uniform(k_b2, (5,), jnp.float32,
                            -1.0 / np.sqrt(fan2), 1.0 / np.sqrt(fan2))

    fn = jax.jit(fused_double_conv_transpose_tanh)
    out = jax.block_until_ready(fn(x, w1, b1, w2, b2))

    x_np = np.asarray(x)
    ref1 = _convt_ref(x_np, np.asarray(w1), np.asarray(b1))
    ref2 = np.tanh(_convt_ref(ref1, np.asarray(w2), np.asarray(b2)))
    assert out.shape == (2, 5, 18, 18), out.shape
    np.testing.assert_allclose(np.asarray(out), ref2, rtol=1e-5, atol=1e-5)

    print("KERNEL_OK")
</pallas_src>

<mosaic_0001>
module attributes {stable_mosaic.version = 11 : i64} {
  func.func @kernel(%arg0: memref<2x3x18x18xf32, #tpu.memory_space<vmem>>, %arg1: memref<12x1x34xf32, #tpu.memory_space<vmem>>, %arg2: memref<1x34xf32, #tpu.memory_space<vmem>>, %arg3: memref<8x1x90xf32, #tpu.memory_space<vmem>>, %arg4: memref<1x90xf32, #tpu.memory_space<vmem>>, %arg5: memref<2x18x90xf32, #tpu.memory_space<vmem>>) attributes {dimension_semantics = [], scalar_prefetch = 0 : i64, scratch_operands = 0 : i64, tpu.core_type = #tpu.core_type<tc>} {
    %c0 = arith.constant 0 : index
    %c0_0 = arith.constant 0 : index
    %c0_1 = arith.constant 0 : index
    %0 = vector.load %arg1[%c0, %c0_0, %c0_1] : memref<12x1x34xf32, #tpu.memory_space<vmem>>, vector<1x1x34xf32>
    %1 = vector.shape_cast %0 : vector<1x1x34xf32> to vector<1x34xf32>
    %c1 = arith.constant 1 : index
    %c0_2 = arith.constant 0 : index
    %c0_3 = arith.constant 0 : index
    %2 = vector.load %arg1[%c1, %c0_2, %c0_3] : memref<12x1x34xf32, #tpu.memory_space<vmem>>, vector<1x1x34xf32>
    %3 = vector.shape_cast %2 : vector<1x1x34xf32> to vector<1x34xf32>
    %c2 = arith.constant 2 : index
    %c0_4 = arith.constant 0 : index
    %c0_5 = arith.constant 0 : index
    %4 = vector.load %arg1[%c2, %c0_4, %c0_5] : memref<12x1x34xf32, #tpu.memory_space<vmem>>, vector<1x1x34xf32>
    %5 = vector.shape_cast %4 : vector<1x1x34xf32> to vector<1x34xf32>
    %c3 = arith.constant 3 : index
    %c0_6 = arith.constant 0 : index
    %c0_7 = arith.constant 0 : index
    %6 = vector.load %arg1[%c3, %c0_6, %c0_7] : memref<12x1x34xf32, #tpu.memory_space<vmem>>, vector<1x1x34xf32>
    %7 = vector.shape_cast %6 : vector<1x1x34xf32> to vector<1x34xf32>
    %c4 = arith.constant 4 : index
    %c0_8 = arith.constant 0 : index
    %c0_9 = arith.constant 0 : index
    %8 = vector.load %arg1[%c4, %c0_8, %c0_9] : memref<12x1x34xf32, #tpu.memory_space<vmem>>, vector<1x1x34xf32>
    %9 = vector.shape_cast %8 : vector<1x1x34xf32> to vector<1x34xf32>
    %c5 = arith.constant 5 : index
    %c0_10 = arith.constant 0 : index
    %c0_11 = arith.constant 0 : index
    %10 = vector.load %arg1[%c5, %c0_10, %c0_11] : memref<12x1x34xf32, #tpu.memory_space<vmem>>, vector<1x1x34xf32>
    %11 = vector.shape_cast %10 : vector<1x1x34xf32> to vector<1x34xf32>
    %c6 = arith.constant 6 : index
    %c0_12 = arith.constant 0 : index
    %c0_13 = arith.constant 0 : index
    %12 = vector.load %arg1[%c6, %c0_12, %c0_13] : memref<12x1x34xf32, #tpu.memory_space<vmem>>, vector<1x1x34xf32>
    %13 = vector.shape_cast %12 : vector<1x1x34xf32> to vector<1x34xf32>
    %c7 = arith.constant 7 : index
    %c0_14 = arith.constant 0 : index
    %c0_15 = arith.constant 0 : index
    %14 = vector.load %arg1[%c7, %c0_14, %c0_15] : memref<12x1x34xf32, #tpu.memory_space<vmem>>, vector<1x1x34xf32>
    %15 = vector.shape_cast %14 : vector<1x1x34xf32> to vector<1x34xf32>
    %c8 = arith.constant 8 : index
    %c0_16 = arith.constant 0 : index
    %c0_17 = arith.constant 0 : index
    %16 = vector.load %arg1[%c8, %c0_16, %c0_17] : memref<12x1x34xf32, #tpu.memory_space<vmem>>, vector<1x1x34xf32>
    %17 = vector.shape_cast %16 : vector<1x1x34xf32> to vector<1x34xf32>
    %c9 = arith.constant 9 : index
    %c0_18 = arith.constant 0 : index
    %c0_19 = arith.constant 0 : index
    %18 = vector.load %arg1[%c9, %c0_18, %c0_19] : memref<12x1x34xf32, #tpu.memory_space<vmem>>, vector<1x1x34xf32>
    %19 = vector.shape_cast %18 : vector<1x1x34xf32> to vector<1x34xf32>
    %c10 = arith.constant 10 : index
    %c0_20 = arith.constant 0 : index
    %c0_21 = arith.constant 0 : index
    %20 = vector.load %arg1[%c10, %c0_20, %c0_21] : memref<12x1x34xf32, #tpu.memory_space<vmem>>, vector<1x1x34xf32>
    %21 = vector.shape_cast %20 : vector<1x1x34xf32> to vector<1x34xf32>
    %c11 = arith.constant 11 : index
    %c0_22 = arith.constant 0 : index
    %c0_23 = arith.constant 0 : index
    %22 = vector.load %arg1[%c11, %c0_22, %c0_23] : memref<12x1x34xf32, #tpu.memory_space<vmem>>, vector<1x1x34xf32>
    %23 = vector.shape_cast %22 : vector<1x1x34xf32> to vector<1x34xf32>
    %c0_24 = arith.constant 0 : index
    %c0_25 = arith.constant 0 : index
    %c0_26 = arith.constant 0 : index
    %24 = vector.load %arg3[%c0_24, %c0_25, %c0_26] : memref<8x1x90xf32, #tpu.memory_space<vmem>>, vector<1x1x90xf32>
    %25 = vector.shape_cast %24 : vector<1x1x90xf32> to vector<1x90xf32>
    %c1_27 = arith.constant 1 : index
    %c0_28 = arith.constant 0 : index
    %c0_29 = arith.constant 0 : index
    %26 = vector.load %arg3[%c1_27, %c0_28, %c0_29] : memref<8x1x90xf32, #tpu.memory_space<vmem>>, vector<1x1x90xf32>
    %27 = vector.shape_cast %26 : vector<1x1x90xf32> to vector<1x90xf32>
    %c2_30 = arith.constant 2 : index
    %c0_31 = arith.constant 0 : index
    %c0_32 = arith.constant 0 : index
    %28 = vector.load %arg3[%c2_30, %c0_31, %c0_32] : memref<8x1x90xf32, #tpu.memory_space<vmem>>, vector<1x1x90xf32>
    %29 = vector.shape_cast %28 : vector<1x1x90xf32> to vector<1x90xf32>
    %c3_33 = arith.constant 3 : index
    %c0_34 = arith.constant 0 : index
    %c0_35 = arith.constant 0 : index
    %30 = vector.load %arg3[%c3_33, %c0_34, %c0_35] : memref<8x1x90xf32, #tpu.memory_space<vmem>>, vector<1x1x90xf32>
    %31 = vector.shape_cast %30 : vector<1x1x90xf32> to vector<1x90xf32>
    %c4_36 = arith.constant 4 : index
    %c0_37 = arith.constant 0 : index
    %c0_38 = arith.constant 0 : index
    %32 = vector.load %arg3[%c4_36, %c0_37, %c0_38] : memref<8x1x90xf32, #tpu.memory_space<vmem>>, vector<1x1x90xf32>
    %33 = vector.shape_cast %32 : vector<1x1x90xf32> to vector<1x90xf32>
    %c5_39 = arith.constant 5 : index
    %c0_40 = arith.constant 0 : index
    %c0_41 = arith.constant 0 : index
    %34 = vector.load %arg3[%c5_39, %c0_40, %c0_41] : memref<8x1x90xf32, #tpu.memory_space<vmem>>, vector<1x1x90xf32>
    %35 = vector.shape_cast %34 : vector<1x1x90xf32> to vector<1x90xf32>
    %c6_42 = arith.constant 6 : index
    %c0_43 = arith.constant 0 : index
    %c0_44 = arith.constant 0 : index
    %36 = vector.load %arg3[%c6_42, %c0_43, %c0_44] : memref<8x1x90xf32, #tpu.memory_space<vmem>>, vector<1x1x90xf32>
    %37 = vector.shape_cast %36 : vector<1x1x90xf32> to vector<1x90xf32>
    %c7_45 = arith.constant 7 : index
    %c0_46 = arith.constant 0 : index
    %c0_47 = arith.constant 0 : index
    %38 = vector.load %arg3[%c7_45, %c0_46, %c0_47] : memref<8x1x90xf32, #tpu.memory_space<vmem>>, vector<1x1x90xf32>
    %39 = vector.shape_cast %38 : vector<1x1x90xf32> to vector<1x90xf32>
    %c0_48 = arith.constant 0 : index
    %c0_49 = arith.constant 0 : index
    %40 = vector.load %arg2[%c0_48, %c0_49] : memref<1x34xf32, #tpu.memory_space<vmem>>, vector<1x34xf32>
    %c0_50 = arith.constant 0 : index
    %c0_51 = arith.constant 0 : index
    %41 = vector.load %arg4[%c0_50, %c0_51] : memref<1x90xf32, #tpu.memory_space<vmem>>, vector<1x90xf32>
    %cst = arith.constant 0.000000e+00 : f32
    %42 = vector.broadcast %cst : f32 to vector<17x1xf32>
    %cst_52 = arith.constant 0.000000e+00 : f32
    %43 = vector.broadcast %cst_52 : f32 to vector<1x18xf32>
    %cst_53 = arith.constant 0.000000e+00 : f32
    %44 = vector.broadcast %cst_53 : f32 to vector<17x34xf32>
    %c0_54 = arith.constant 0 : index
    %c0_55 = arith.constant 0 : index
    %c0_56 = arith.constant 0 : index
    %c0_57 = arith.constant 0 : index
    %45 = vector.load %arg0[%c0_54, %c0_55, %c0_56, %c0_57] : memref<2x3x18x18xf32, #tpu.memory_space<vmem>>, vector<1x1x17x17xf32>
    %46 = vector.shape_cast %45 : vector<1x1x17x17xf32> to vector<17x17xf32>
    %47 = tpu.concatenate %46, %46 in 1 : vector<17x17xf32>, vector<17x17xf32> -> vector<17x34xf32>
    %48 = vector.broadcast %1 : vector<1x34xf32> to vector<17x34xf32>
    %49 = arith.mulf %47, %48 : vector<17x34xf32>
    %50 = arith.addf %44, %49 : vector<17x34xf32>
    %c0_58 = arith.constant 0 : index
    %c0_59 = arith.constant 0 : index
    %c0_60 = arith.constant 0 : index
    %c1_61 = arith.constant 1 : index
    %51 = vector.load %arg0[%c0_58, %c0_59, %c0_60, %c1_61] : memref<2x3x18x18xf32, #tpu.memory_space<vmem>>, vector<1x1x17x17xf32>
    %52 = vector.shape_cast %51 : vector<1x1x17x17xf32> to vector<17x17xf32>
    %53 = tpu.concatenate %52, %52 in 1 : vector<17x17xf32>, vector<17x17xf32> -> vector<17x34xf32>
    %54 = vector.broadcast %3 : vector<1x34xf32> to vector<17x34xf32>
    %55 = arith.mulf %53, %54 : vector<17x34xf32>
    %56 = arith.addf %50, %55 : vector<17x34xf32>
    %c0_62 = arith.constant 0 : index
    %c0_63 = arith.constant 0 : index
    %c1_64 = arith.constant 1 : index
    %c0_65 = arith.constant 0 : index
    %57 = vector.load %arg0[%c0_62, %c0_63, %c1_64, %c0_65] : memref<2x3x18x18xf32, #tpu.memory_space<vmem>>, vector<1x1x17x17xf32>
    %58 = vector.shape_cast %57 : vector<1x1x17x17xf32> to vector<17x17xf32>
    %59 = tpu.concatenate %58, %58 in 1 : vector<17x17xf32>, vector<17x17xf32> -> vector<17x34xf32>
    %60 = vector.broadcast %5 : vector<1x34xf32> to vector<17x34xf32>
    %61 = arith.mulf %59, %60 : vector<17x34xf32>
    %62 = arith.addf %56, %61 : vector<17x34xf32>
    %c0_66 = arith.constant 0 : index
    %c0_67 = arith.constant 0 : index
    %c1_68 = arith.constant 1 : index
    %c1_69 = arith.constant 1 : index
    %63 = vector.load %arg0[%c0_66, %c0_67, %c1_68, %c1_69] : memref<2x3x18x18xf32, #tpu.memory_space<vmem>>, vector<1x1x17x17xf32>
    %64 = vector.shape_cast %63 : vector<1x1x17x17xf32> to vector<17x17xf32>
    %65 = tpu.concatenate %64, %64 in 1 : vector<17x17xf32>, vector<17x17xf32> -> vector<17x34xf32>
    %66 = vector.broadcast %7 : vector<1x34xf32> to vector<17x34xf32>
    %67 = arith.mulf %65, %66 : vector<17x34xf32>
    %68 = arith.addf %62, %67 : vector<17x34xf32>
    %c0_70 = arith.constant 0 : index
    %c1_71 = arith.constant 1 : index
    %c0_72 = arith.constant 0 : index
    %c0_73 = arith.constant 0 : index
    %69 = vector.load %arg0[%c0_70, %c1_71, %c0_72, %c0_73] : memref<2x3x18x18xf32, #tpu.memory_space<vmem>>, vector<1x1x17x17xf32>
    %70 = vector.shape_cast %69 : vector<1x1x17x17xf32> to vector<17x17xf32>
    %71 = tpu.concatenate %70, %70 in 1 : vector<17x17xf32>, vector<17x17xf32> -> vector<17x34xf32>
    %72 = vector.broadcast %9 : vector<1x34xf32> to vector<17x34xf32>
    %73 = arith.mulf %71, %72 : vector<17x34xf32>
    %74 = arith.addf %68, %73 : vector<17x34xf32>
    %c0_74 = arith.constant 0 : index
    %c1_75 = arith.constant 1 : index
    %c0_76 = arith.constant 0 : index
    %c1_77 = arith.constant 1 : index
    %75 = vector.load %arg0[%c0_74, %c1_75, %c0_76, %c1_77] : memref<2x3x18x18xf32, #tpu.memory_space<vmem>>, vector<1x1x17x17xf32>
    %76 = vector.shape_cast %75 : vector<1x1x17x17xf32> to vector<17x17xf32>
    %77 = tpu.concatenate %76, %76 in 1 : vector<17x17xf32>, vector<17x17xf32> -> vector<17x34xf32>
    %78 = vector.broadcast %11 : vector<1x34xf32> to vector<17x34xf32>
    %79 = arith.mulf %77, %78 : vector<17x34xf32>
    %80 = arith.addf %74, %79 : vector<17x34xf32>
    %c0_78 = arith.constant 0 : index
    %c1_79 = arith.constant 1 : index
    %c1_80 = arith.constant 1 : index
    %c0_81 = arith.constant 0 : index
    %81 = vector.load %arg0[%c0_78, %c1_79, %c1_80, %c0_81] : memref<2x3x18x18xf32, #tpu.memory_space<vmem>>, vector<1x1x17x17xf32>
    %82 = vector.shape_cast %81 : vector<1x1x17x17xf32> to vector<17x17xf32>
    %83 = tpu.concatenate %82, %82 in 1 : vector<17x17xf32>, vector<17x17xf32> -> vector<17x34xf32>
    %84 = vector.broadcast %13 : vector<1x34xf32> to vector<17x34xf32>
    %85 = arith.mulf %83, %84 : vector<17x34xf32>
    %86 = arith.addf %80, %85 : vector<17x34xf32>
    %c0_82 = arith.constant 0 : index
    %c1_83 = arith.constant 1 : index
    %c1_84 = arith.constant 1 : index
    %c1_85 = arith.constant 1 : index
    %87 = vector.load %arg0[%c0_82, %c1_83, %c1_84, %c1_85] : memref<2x3x18x18xf32, #tpu.memory_space<vmem>>, vector<1x1x17x17xf32>
    %88 = vector.shape_cast %87 : vector<1x1x17x17xf32> to vector<17x17xf32>
    %89 = tpu.concatenate %88, %88 in 1 : vector<17x17xf32>, vector<17x17xf32> -> vector<17x34xf32>
    %90 = vector.broadcast %15 : vector<1x34xf32> to vector<17x34xf32>
    %91 = arith.mulf %89, %90 : vector<17x34xf32>
    %92 = arith.addf %86, %91 : vector<17x34xf32>
    %c0_86 = arith.constant 0 : index
    %c2_87 = arith.constant 2 : index
    %c0_88 = arith.constant 0 : index
    %c0_89 = arith.constant 0 : index
    %93 = vector.load %arg0[%c0_86, %c2_87, %c0_88, %c0_89] : memref<2x3x18x18xf32, #tpu.memory_space<vmem>>, vector<1x1x17x17xf32>
    %94 = vector.shape_cast %93 : vector<1x1x17x17xf32> to vector<17x17xf32>
    %95 = tpu.concatenate %94, %94 in 1 : vector<17x17xf32>, vector<17x17xf32> -> vector<17x34xf32>
    %96 = vector.broadcast %17 : vector<1x34xf32> to vector<17x34xf32>
    %97 = arith.mulf %95, %96 : vector<17x34xf32>
    %98 = arith.addf %92, %97 : vector<17x34xf32>
    %c0_90 = arith.constant 0 : index
    %c2_91 = arith.constant 2 : index
    %c0_92 = arith.constant 0 : index
    %c1_93 = arith.constant 1 : index
    %99 = vector.load %arg0[%c0_90, %c2_91, %c0_92, %c1_93] : memref<2x3x18x18xf32, #tpu.memory_space<vmem>>, vector<1x1x17x17xf32>
    %100 = vector.shape_cast %99 : vector<1x1x17x17xf32> to vector<17x17xf32>
    %101 = tpu.concatenate %100, %100 in 1 : vector<17x17xf32>, vector<17x17xf32> -> vector<17x34xf32>
    %102 = vector.broadcast %19 : vector<1x34xf32> to vector<17x34xf32>
    %103 = arith.mulf %101, %102 : vector<17x34xf32>
    %104 = arith.addf %98, %103 : vector<17x34xf32>
    %c0_94 = arith.constant 0 : index
    %c2_95 = arith.constant 2 : index
    %c1_96 = arith.constant 1 : index
    %c0_97 = arith.constant 0 : index
    %105 = vector.load %arg0[%c0_94, %c2_95, %c1_96, %c0_97] : memref<2x3x18x18xf32, #tpu.memory_space<vmem>>, vector<1x1x17x17xf32>
    %106 = vector.shape_cast %105 : vector<1x1x17x17xf32> to vector<17x17xf32>
    %107 = tpu.concatenate %106, %106 in 1 : vector<17x17xf32>, vector<17x17xf32> -> vector<17x34xf32>
    %108 = vector.broadcast %21 : vector<1x34xf32> to vector<17x34xf32>
    %109 = arith.mulf %107, %108 : vector<17x34xf32>
    %110 = arith.addf %104, %109 : vector<17x34xf32>
    %c0_98 = arith.constant 0 : index
    %c2_99 = arith.constant 2 : index
    %c1_100 = arith.constant 1 : index
    %c1_101 = arith.constant 1 : index
    %111 = vector.load %arg0[%c0_98, %c2_99, %c1_100, %c1_101] : memref<2x3x18x18xf32, #tpu.memory_space<vmem>>, vector<1x1x17x17xf32>
    %112 = vector.shape_cast %111 : vector<1x1x17x17xf32> to vector<17x17xf32>
    %113 = tpu.concatenate %112, %112 in 1 : vector<17x17xf32>, vector<17x17xf32> -> vector<17x34xf32>
    %114 = vector.broadcast %23 : vector<1x34xf32> to vector<17x34xf32>
    %115 = arith.mulf %113, %114 : vector<17x34xf32>
    %116 = arith.addf %110, %115 : vector<17x34xf32>
    %117 = vector.broadcast %40 : vector<1x34xf32> to vector<17x34xf32>
    %118 = arith.addf %116, %117 : vector<17x34xf32>
    %119 = vector.extract_strided_slice %118 {offsets = [0, 0], sizes = [17, 17], strides = [1, 1]} : vector<17x34xf32> to vector<17x17xf32>
    %120 = vector.extract_strided_slice %118 {offsets = [0, 17], sizes = [17, 17], strides = [1, 1]} : vector<17x34xf32> to vector<17x17xf32>
    %cst_102 = arith.constant 0.000000e+00 : f32
    %121 = vector.broadcast %cst_102 : f32 to vector<18x90xf32>
    %122 = tpu.concatenate %42, %119 in 1 : vector<17x1xf32>, vector<17x17xf32> -> vector<17x18xf32>
    %123 = tpu.concatenate %119, %42 in 1 : vector<17x17xf32>, vector<17x1xf32> -> vector<17x18xf32>
    %124 = tpu.concatenate %43, %122 in 0 : vector<1x18xf32>, vector<17x18xf32> -> vector<18x18xf32>
    %125 = tpu.concatenate %124, %124, %124, %124, %124 in 1 : vector<18x18xf32>, vector<18x18xf32>, vector<18x18xf32>, vector<18x18xf32>, vector<18x18xf32> -> vector<18x90xf32>
    %126 = vector.broadcast %25 : vector<1x90xf32> to vector<18x90xf32>
    %127 = arith.mulf %125, %126 : vector<18x90xf32>
    %128 = arith.addf %121, %127 : vector<18x90xf32>
    %129 = tpu.concatenate %43, %123 in 0 : vector<1x18xf32>, vector<17x18xf32> -> vector<18x18xf32>
    %130 = tpu.concatenate %129, %129, %129, %129, %129 in 1 : vector<18x18xf32>, vector<18x18xf32>, vector<18x18xf32>, vector<18x18xf32>, vector<18x18xf32> -> vector<18x90xf32>
    %131 = vector.broadcast %27 : vector<1x90xf32> to vector<18x90xf32>
    %132 = arith.mulf %130, %131 : vector<18x90xf32>
    %133 = arith.addf %128, %132 : vector<18x90xf32>
    %134 = tpu.concatenate %122, %43 in 0 : vector<17x18xf32>, vector<1x18xf32> -> vector<18x18xf32>
    %135 = tpu.concatenate %134, %134, %134, %134, %134 in 1 : vector<18x18xf32>, vector<18x18xf32>, vector<18x18xf32>, vector<18x18xf32>, vector<18x18xf32> -> vector<18x90xf32>
    %136 = vector.broadcast %29 : vector<1x90xf32> to vector<18x90xf32>
    %137 = arith.mulf %135, %136 : vector<18x90xf32>
    %138 = arith.addf %133, %137 : vector<18x90xf32>
    %139 = tpu.concatenate %123, %43 in 0 : vector<17x18xf32>, vector<1x18xf32> -> vector<18x18xf32>
    %140 = tpu.concatenate %139, %139, %139, %139, %139 in 1 : vector<18x18xf32>, vector<18x18xf32>, vector<18x18xf32>, vector<18x18xf32>, vector<18x18xf32> -> vector<18x90xf32>
    %141 = vector.broadcast %31 : vector<1x90xf32> to vector<18x90xf32>
    %142 = arith.mulf %140, %141 : vector<18x90xf32>
    %143 = arith.addf %138, %142 : vector<18x90xf32>
    %144 = tpu.concatenate %42, %120 in 1 : vector<17x1xf32>, vector<17x17xf32> -> vector<17x18xf32>
    %145 = tpu.concatenate %120, %42 in 1 : vector<17x17xf32>, vector<17x1xf32> -> vector<17x18xf32>
    %146 = tpu.concatenate %43, %144 in 0 : vector<1x18xf32>, vector<17x18xf32> -> vector<18x18xf32>
    %147 = tpu.concatenate %146, %146, %146, %146, %146 in 1 : vector<18x18xf32>, vector<18x18xf32>, vector<18x18xf32>, vector<18x18xf32>, vector<18x18xf32> -> vector<18x90xf32>
    %148 = vector.broadcast %33 : vector<1x90xf32> to vector<18x90xf32>
    %149 = arith.mulf %147, %148 : vector<18x90xf32>
    %150 = arith.addf %143, %149 : vector<18x90xf32>
    %151 = tpu.concatenate %43, %145 in 0 : vector<1x18xf32>, vector<17x18xf32> -> vector<18x18xf32>
    %152 = tpu.concatenate %151, %151, %151, %151, %151 in 1 : vector<18x18xf32>, vector<18x18xf32>, vector<18x18xf32>, vector<18x18xf32>, vector<18x18xf32> -> vector<18x90xf32>
    %153 = vector.broadcast %35 : vector<1x90xf32> to vector<18x90xf32>
    %154 = arith.mulf %152, %153 : vector<18x90xf32>
    %155 = arith.addf %150, %154 : vector<18x90xf32>
    %156 = tpu.concatenate %144, %43 in 0 : vector<17x18xf32>, vector<1x18xf32> -> vector<18x18xf32>
    %157 = tpu.concatenate %156, %156, %156, %156, %156 in 1 : vector<18x18xf32>, vector<18x18xf32>, vector<18x18xf32>, vector<18x18xf32>, vector<18x18xf32> -> vector<18x90xf32>
    %158 = vector.broadcast %37 : vector<1x90xf32> to vector<18x90xf32>
    %159 = arith.mulf %157, %158 : vector<18x90xf32>
    %160 = arith.addf %155, %159 : vector<18x90xf32>
    %161 = tpu.concatenate %145, %43 in 0 : vector<17x18xf32>, vector<1x18xf32> -> vector<18x18xf32>
    %162 = tpu.concatenate %161, %161, %161, %161, %161 in 1 : vector<18x18xf32>, vector<18x18xf32>, vector<18x18xf32>, vector<18x18xf32>, vector<18x18xf32> -> vector<18x90xf32>
    %163 = vector.broadcast %39 : vector<1x90xf32> to vector<18x90xf32>
    %164 = arith.mulf %162, %163 : vector<18x90xf32>
    %165 = arith.addf %160, %164 : vector<18x90xf32>
    %166 = vector.broadcast %41 : vector<1x90xf32> to vector<18x90xf32>
    %167 = arith.addf %165, %166 : vector<18x90xf32>
    %168 = math.tanh %167 : vector<18x90xf32>
    %c0_103 = arith.constant 0 : index
    %c0_104 = arith.constant 0 : index
    %c0_105 = arith.constant 0 : index
    %169 = vector.load %arg5[%c0_103, %c0_104, %c0_105] : memref<2x18x90xf32, #tpu.memory_space<vmem>>, vector<1x18x90xf32>
    %170 = vector.shape_cast %169 : vector<1x18x90xf32> to vector<18x90xf32>
    %171 = vector.shape_cast %168 : vector<18x90xf32> to vector<1x18x90xf32>
    tpu.vector_store %arg5[%c0_103, %c0_104, %c0_105], %171 {strides = array<i32>} : memref<2x18x90xf32, #tpu.memory_space<vmem>>, vector<1x18x90xf32>,
    %cst_106 = arith.constant 0.000000e+00 : f32
    %172 = vector.broadcast %cst_106 : f32 to vector<17x34xf32>
    %c1_107 = arith.constant 1 : index
    %c0_108 = arith.constant 0 : index
    %c0_109 = arith.constant 0 : index
    %c0_110 = arith.constant 0 : index
    %173 = vector.load %arg0[%c1_107, %c0_108, %c0_109, %c0_110] : memref<2x3x18x18xf32, #tpu.memory_space<vmem>>, vector<1x1x17x17xf32>
    %174 = vector.shape_cast %173 : vector<1x1x17x17xf32> to vector<17x17xf32>
    %175 = tpu.concatenate %174, %174 in 1 : vector<17x17xf32>, vector<17x17xf32> -> vector<17x34xf32>
    %176 = vector.broadcast %1 : vector<1x34xf32> to vector<17x34xf32>
    %177 = arith.mulf %175, %176 : vector<17x34xf32>
    %178 = arith.addf %172, %177 : vector<17x34xf32>
    %c1_111 = arith.constant 1 : index
    %c0_112 = arith.constant 0 : index
    %c0_113 = arith.constant 0 : index
    %c1_114 = arith.constant 1 : index
    %179 = vector.load %arg0[%c1_111, %c0_112, %c0_113, %c1_114] : memref<2x3x18x18xf32, #tpu.memory_space<vmem>>, vector<1x1x17x17xf32>
    %180 = vector.shape_cast %179 : vector<1x1x17x17xf32> to vector<17x17xf32>
    %181 = tpu.concatenate %180, %180 in 1 : vector<17x17xf32>, vector<17x17xf32> -> vector<17x34xf32>
    %182 = vector.broadcast %3 : vector<1x34xf32> to vector<17x34xf32>
    %183 = arith.mulf %181, %182 : vector<17x34xf32>
    %184 = arith.addf %178, %183 : vector<17x34xf32>
    %c1_115 = arith.constant 1 : index
    %c0_116 = arith.constant 0 : index
    %c1_117 = arith.constant 1 : index
    %c0_118 = arith.constant 0 : index
    %185 = vector.load %arg0[%c1_115, %c0_116, %c1_117, %c0_118] : memref<2x3x18x18xf32, #tpu.memory_space<vmem>>, vector<1x1x17x17xf32>
    %186 = vector.shape_cast %185 : vector<1x1x17x17xf32> to vector<17x17xf32>
    %187 = tpu.concatenate %186, %186 in 1 : vector<17x17xf32>, vector<17x17xf32> -> vector<17x34xf32>
    %188 = vector.broadcast %5 : vector<1x34xf32> to vector<17x34xf32>
    %189 = arith.mulf %187, %188 : vector<17x34xf32>
    %190 = arith.addf %184, %189 : vector<17x34xf32>
    %c1_119 = arith.constant 1 : index
    %c0_120 = arith.constant 0 : index
    %c1_121 = arith.constant 1 : index
    %c1_122 = arith.constant 1 : index
    %191 = vector.load %arg0[%c1_119, %c0_120, %c1_121, %c1_122] : memref<2x3x18x18xf32, #tpu.memory_space<vmem>>, vector<1x1x17x17xf32>
    %192 = vector.shape_cast %191 : vector<1x1x17x17xf32> to vector<17x17xf32>
    %193 = tpu.concatenate %192, %192 in 1 : vector<17x17xf32>, vector<17x17xf32> -> vector<17x34xf32>
    %194 = vector.broadcast %7 : vector<1x34xf32> to vector<17x34xf32>
    %195 = arith.mulf %193, %194 : vector<17x34xf32>
    %196 = arith.addf %190, %195 : vector<17x34xf32>
    %c1_123 = arith.constant 1 : index
    %c1_124 = arith.constant 1 : index
    %c0_125 = arith.constant 0 : index
    %c0_126 = arith.constant 0 : index
    %197 = vector.load %arg0[%c1_123, %c1_124, %c0_125, %c0_126] : memref<2x3x18x18xf32, #tpu.memory_space<vmem>>, vector<1x1x17x17xf32>
    %198 = vector.shape_cast %197 : vector<1x1x17x17xf32> to vector<17x17xf32>
    %199 = tpu.concatenate %198, %198 in 1 : vector<17x17xf32>, vector<17x17xf32> -> vector<17x34xf32>
    %200 = vector.broadcast %9 : vector<1x34xf32> to vector<17x34xf32>
    %201 = arith.mulf %199, %200 : vector<17x34xf32>
    %202 = arith.addf %196, %201 : vector<17x34xf32>
    %c1_127 = arith.constant 1 : index
    %c1_128 = arith.constant 1 : index
    %c0_129 = arith.constant 0 : index
    %c1_130 = arith.constant 1 : index
    %203 = vector.load %arg0[%c1_127, %c1_128, %c0_129, %c1_130] : memref<2x3x18x18xf32, #tpu.memory_space<vmem>>, vector<1x1x17x17xf32>
    %204 = vector.shape_cast %203 : vector<1x1x17x17xf32> to vector<17x17xf32>
    %205 = tpu.concatenate %204, %204 in 1 : vector<17x17xf32>, vector<17x17xf32> -> vector<17x34xf32>
    %206 = vector.broadcast %11 : vector<1x34xf32> to vector<17x34xf32>
    %207 = arith.mulf %205, %206 : vector<17x34xf32>
    %208 = arith.addf %202, %207 : vector<17x34xf32>
    %c1_131 = arith.constant 1 : index
    %c1_132 = arith.constant 1 : index
    %c1_133 = arith.constant 1 : index
    %c0_134 = arith.constant 0 : index
    %209 = vector.load %arg0[%c1_131, %c1_132, %c1_133, %c0_134] : memref<2x3x18x18xf32, #tpu.memory_space<vmem>>, vector<1x1x17x17xf32>
    %210 = vector.shape_cast %209 : vector<1x1x17x17xf32> to vector<17x17xf32>
    %211 = tpu.concatenate %210, %210 in 1 : vector<17x17xf32>, vector<17x17xf32> -> vector<17x34xf32>
    %212 = vector.broadcast %13 : vector<1x34xf32> to vector<17x34xf32>
    %213 = arith.mulf %211, %212 : vector<17x34xf32>
    %214 = arith.addf %208, %213 : vector<17x34xf32>
    %c1_135 = arith.constant 1 : index
    %c1_136 = arith.constant 1 : index
    %c1_137 = arith.constant 1 : index
    %c1_138 = arith.constant 1 : index
    %215 = vector.load %arg0[%c1_135, %c1_136, %c1_137, %c1_138] : memref<2x3x18x18xf32, #tpu.memory_space<vmem>>, vector<1x1x17x17xf32>
    %216 = vector.shape_cast %215 : vector<1x1x17x17xf32> to vector<17x17xf32>
    %217 = tpu.concatenate %216, %216 in 1 : vector<17x17xf32>, vector<17x17xf32> -> vector<17x34xf32>
    %218 = vector.broadcast %15 : vector<1x34xf32> to vector<17x34xf32>
    %219 = arith.mulf %217, %218 : vector<17x34xf32>
    %220 = arith.addf %214, %219 : vector<17x34xf32>
    %c1_139 = arith.constant 1 : index
    %c2_140 = arith.constant 2 : index
    %c0_141 = arith.constant 0 : index
    %c0_142 = arith.constant 0 : index
    %221 = vector.load %arg0[%c1_139, %c2_140, %c0_141, %c0_142] : memref<2x3x18x18xf32, #tpu.memory_space<vmem>>, vector<1x1x17x17xf32>
    %222 = vector.shape_cast %221 : vector<1x1x17x17xf32> to vector<17x17xf32>
    %223 = tpu.concatenate %222, %222 in 1 : vector<17x17xf32>, vector<17x17xf32> -> vector<17x34xf32>
    %224 = vector.broadcast %17 : vector<1x34xf32> to vector<17x34xf32>
    %225 = arith.mulf %223, %224 : vector<17x34xf32>
    %226 = arith.addf %220, %225 : vector<17x34xf32>
    %c1_143 = arith.constant 1 : index
    %c2_144 = arith.constant 2 : index
    %c0_145 = arith.constant 0 : index
    %c1_146 = arith.constant 1 : index
    %227 = vector.load %arg0[%c1_143, %c2_144, %c0_145, %c1_146] : memref<2x3x18x18xf32, #tpu.memory_space<vmem>>, vector<1x1x17x17xf32>
    %228 = vector.shape_cast %227 : vector<1x1x17x17xf32> to vector<17x17xf32>
    %229 = tpu.concatenate %228, %228 in 1 : vector<17x17xf32>, vector<17x17xf32> -> vector<17x34xf32>
    %230 = vector.broadcast %19 : vector<1x34xf32> to vector<17x34xf32>
    %231 = arith.mulf %229, %230 : vector<17x34xf32>
    %232 = arith.addf %226, %231 : vector<17x34xf32>
    %c1_147 = arith.constant 1 : index
    %c2_148 = arith.constant 2 : index
    %c1_149 = arith.constant 1 : index
    %c0_150 = arith.constant 0 : index
    %233 = vector.load %arg0[%c1_147, %c2_148, %c1_149, %c0_150] : memref<2x3x18x18xf32, #tpu.memory_space<vmem>>, vector<1x1x17x17xf32>
    %234 = vector.shape_cast %233 : vector<1x1x17x17xf32> to vector<17x17xf32>
    %235 = tpu.concatenate %234, %234 in 1 : vector<17x17xf32>, vector<17x17xf32> -> vector<17x34xf32>
    %236 = vector.broadcast %21 : vector<1x34xf32> to vector<17x34xf32>
    %237 = arith.mulf %235, %236 : vector<17x34xf32>
    %238 = arith.addf %232, %237 : vector<17x34xf32>
    %c1_151 = arith.constant 1 : index
    %c2_152 = arith.constant 2 : index
    %c1_153 = arith.constant 1 : index
    %c1_154 = arith.constant 1 : index
    %239 = vector.load %arg0[%c1_151, %c2_152, %c1_153, %c1_154] : memref<2x3x18x18xf32, #tpu.memory_space<vmem>>, vector<1x1x17x17xf32>
    %240 = vector.shape_cast %239 : vector<1x1x17x17xf32> to vector<17x17xf32>
    %241 = tpu.concatenate %240, %240 in 1 : vector<17x17xf32>, vector<17x17xf32> -> vector<17x34xf32>
    %242 = vector.broadcast %23 : vector<1x34xf32> to vector<17x34xf32>
    %243 = arith.mulf %241, %242 : vector<17x34xf32>
    %244 = arith.addf %238, %243 : vector<17x34xf32>
    %245 = vector.broadcast %40 : vector<1x34xf32> to vector<17x34xf32>
    %246 = arith.addf %244, %245 : vector<17x34xf32>
    %247 = vector.extract_strided_slice %246 {offsets = [0, 0], sizes = [17, 17], strides = [1, 1]} : vector<17x34xf32> to vector<17x17xf32>
    %248 = vector.extract_strided_slice %246 {offsets = [0, 17], sizes = [17, 17], strides = [1, 1]} : vector<17x34xf32> to vector<17x17xf32>
    %cst_155 = arith.constant 0.000000e+00 : f32
    %249 = vector.broadcast %cst_155 : f32 to vector<18x90xf32>
    %250 = tpu.concatenate %42, %247 in 1 : vector<17x1xf32>, vector<17x17xf32> -> vector<17x18xf32>
    %251 = tpu.concatenate %247, %42 in 1 : vector<17x17xf32>, vector<17x1xf32> -> vector<17x18xf32>
    %252 = tpu.concatenate %43, %250 in 0 : vector<1x18xf32>, vector<17x18xf32> -> vector<18x18xf32>
    %253 = tpu.concatenate %252, %252, %252, %252, %252 in 1 : vector<18x18xf32>, vector<18x18xf32>, vector<18x18xf32>, vector<18x18xf32>, vector<18x18xf32> -> vector<18x90xf32>
    %254 = vector.broadcast %25 : vector<1x90xf32> to vector<18x90xf32>
    %255 = arith.mulf %253, %254 : vector<18x90xf32>
    %256 = arith.addf %249, %255 : vector<18x90xf32>
    %257 = tpu.concatenate %43, %251 in 0 : vector<1x18xf32>, vector<17x18xf32> -> vector<18x18xf32>
    %258 = tpu.concatenate %257, %257, %257, %257, %257 in 1 : vector<18x18xf32>, vector<18x18xf32>, vector<18x18xf32>, vector<18x18xf32>, vector<18x18xf32> -> vector<18x90xf32>
    %259 = vector.broadcast %27 : vector<1x90xf32> to vector<18x90xf32>
    %260 = arith.mulf %258, %259 : vector<18x90xf32>
    %261 = arith.addf %256, %260 : vector<18x90xf32>
    %262 = tpu.concatenate %250, %43 in 0 : vector<17x18xf32>, vector<1x18xf32> -> vector<18x18xf32>
    %263 = tpu.concatenate %262, %262, %262, %262, %262 in 1 : vector<18x18xf32>, vector<18x18xf32>, vector<18x18xf32>, vector<18x18xf32>, vector<18x18xf32> -> vector<18x90xf32>
    %264 = vector.broadcast %29 : vector<1x90xf32> to vector<18x90xf32>
    %265 = arith.mulf %263, %264 : vector<18x90xf32>
    %266 = arith.addf %261, %265 : vector<18x90xf32>
    %267 = tpu.concatenate %251, %43 in 0 : vector<17x18xf32>, vector<1x18xf32> -> vector<18x18xf32>
    %268 = tpu.concatenate %267, %267, %267, %267, %267 in 1 : vector<18x18xf32>, vector<18x18xf32>, vector<18x18xf32>, vector<18x18xf32>, vector<18x18xf32> -> vector<18x90xf32>
    %269 = vector.broadcast %31 : vector<1x90xf32> to vector<18x90xf32>
    %270 = arith.mulf %268, %269 : vector<18x90xf32>
    %271 = arith.addf %266, %270 : vector<18x90xf32>
    %272 = tpu.concatenate %42, %248 in 1 : vector<17x1xf32>, vector<17x17xf32> -> vector<17x18xf32>
    %273 = tpu.concatenate %248, %42 in 1 : vector<17x17xf32>, vector<17x1xf32> -> vector<17x18xf32>
    %274 = tpu.concatenate %43, %272 in 0 : vector<1x18xf32>, vector<17x18xf32> -> vector<18x18xf32>
    %275 = tpu.concatenate %274, %274, %274, %274, %274 in 1 : vector<18x18xf32>, vector<18x18xf32>, vector<18x18xf32>, vector<18x18xf32>, vector<18x18xf32> -> vector<18x90xf32>
    %276 = vector.broadcast %33 : vector<1x90xf32> to vector<18x90xf32>
    %277 = arith.mulf %275, %276 : vector<18x90xf32>
    %278 = arith.addf %271, %277 : vector<18x90xf32>
    %279 = tpu.concatenate %43, %273 in 0 : vector<1x18xf32>, vector<17x18xf32> -> vector<18x18xf32>
    %280 = tpu.concatenate %279, %279, %279, %279, %279 in 1 : vector<18x18xf32>, vector<18x18xf32>, vector<18x18xf32>, vector<18x18xf32>, vector<18x18xf32> -> vector<18x90xf32>
    %281 = vector.broadcast %35 : vector<1x90xf32> to vector<18x90xf32>
    %282 = arith.mulf %280, %281 : vector<18x90xf32>
    %283 = arith.addf %278, %282 : vector<18x90xf32>
    %284 = tpu.concatenate %272, %43 in 0 : vector<17x18xf32>, vector<1x18xf32> -> vector<18x18xf32>
    %285 = tpu.concatenate %284, %284, %284, %284, %284 in 1 : vector<18x18xf32>, vector<18x18xf32>, vector<18x18xf32>, vector<18x18xf32>, vector<18x18xf32> -> vector<18x90xf32>
    %286 = vector.broadcast %37 : vector<1x90xf32> to vector<18x90xf32>
    %287 = arith.mulf %285, %286 : vector<18x90xf32>
    %288 = arith.addf %283, %287 : vector<18x90xf32>
    %289 = tpu.concatenate %273, %43 in 0 : vector<17x18xf32>, vector<1x18xf32> -> vector<18x18xf32>
    %290 = tpu.concatenate %289, %289, %289, %289, %289 in 1 : vector<18x18xf32>, vector<18x18xf32>, vector<18x18xf32>, vector<18x18xf32>, vector<18x18xf32> -> vector<18x90xf32>
    %291 = vector.broadcast %39 : vector<1x90xf32> to vector<18x90xf32>
    %292 = arith.mulf %290, %291 : vector<18x90xf32>
    %293 = arith.addf %288, %292 : vector<18x90xf32>
    %294 = vector.broadcast %41 : vector<1x90xf32> to vector<18x90xf32>
    %295 = arith.addf %293, %294 : vector<18x90xf32>
    %296 = math.tanh %295 : vector<18x90xf32>
    %c1_156 = arith.constant 1 : index
    %c0_157 = arith.constant 0 : index
    %c0_158 = arith.constant 0 : index
    %297 = vector.load %arg5[%c1_156, %c0_157, %c0_158] : memref<2x18x90xf32, #tpu.memory_space<vmem>>, vector<1x18x90xf32>
    %298 = vector.shape_cast %297 : vector<1x18x90xf32> to vector<18x90xf32>
    %299 = vector.shape_cast %296 : vector<18x90xf32> to vector<1x18x90xf32>
    tpu.vector_store %arg5[%c1_156, %c0_157, %c0_158], %299 {strides = array<i32>} : memref<2x18x90xf32, #tpu.memory_space<vmem>>, vector<1x18x90xf32>,
    return
  }
}

</mosaic_0001>

<llo_original>
// kernel: fused_double_conv_transpose_tanh.1
$region0: #{fused_double_conv_transpose_tanh.1}
  #allocation0 [shape = 'u32[]', space=smem, size = 0x4, offset = 0x4, fixed_abs, tag = 'smem constant byte address 0x4 - core index']
  #allocation1 [shape = 'u32[144,128]{1,0:T(1,128)}', space=vmem, size = 0x12000, scoped, tag = 'internal scratch']
  %s0 = inlined_call_operand.vmem [shape: f32[2,3,18,18], index: 0, kind: input, shape index: {}]
  %s1 = inlined_call_operand.vmem [shape: f32[12,1,34], index: 1, kind: input, shape index: {}]
  %s2 = inlined_call_operand.vmem [shape: f32[1,34], index: 2, kind: input, shape index: {}]
  %s3 = inlined_call_operand.vmem [shape: f32[8,1,90], index: 3, kind: input, shape index: {}]
  %s4 = inlined_call_operand.vmem [shape: f32[1,90], index: 4, kind: input, shape index: {}]
  %s5 = inlined_call_operand.vmem [shape: f32[2,18,90], index: 5, kind: output, shape index: {}]
  %s6 = sld [smem:[#allocation0]]
  $region30: #{fused_double_conv_transpose_tanh.1} parent=0
    _
  %s8 = ssub.s32 1, %s6
  %s9 = scalar_select 0, %s8, %s6
  // Predicated region
  $region2: #{fused_double_conv_transpose_tanh.1} parent=0 // pred_check
    _
  $region3: #{fused_double_conv_transpose_tanh.1} parent=0 // pred_check_branch
    %11 = sbr.rel (0) target = $region5
  $region4: #{fused_double_conv_transpose_tanh.1} parent=0 // pred_region
    _
  $region5: #{fused_double_conv_transpose_tanh.1} parent=0 // pred_fallthru
    _
  // Predicated region
  $region6: #{fused_double_conv_transpose_tanh.1} parent=0 // pred_check
    _
  $region7: #{fused_double_conv_transpose_tanh.1} parent=0 // pred_check_branch
    %13 = sbr.rel (0) target = $region9
  $region8: #{fused_double_conv_transpose_tanh.1} parent=0 // pred_region
    _
  $region9: #{fused_double_conv_transpose_tanh.1} parent=0 // pred_fallthru
    _
  // Predicated region
  $region10: #{fused_double_conv_transpose_tanh.1} parent=0 // pred_check
    _
  $region11: #{fused_double_conv_transpose_tanh.1} parent=0 // pred_check_branch
    %15 = sbr.rel (0) target = $region13
  $region12: #{fused_double_conv_transpose_tanh.1} parent=0 // pred_region
    _
  $region13: #{fused_double_conv_transpose_tanh.1} parent=0 // pred_fallthru
    _
  // Predicated region
  $region14: #{fused_double_conv_transpose_tanh.1} parent=0 // pred_check
    _
  $region15: #{fused_double_conv_transpose_tanh.1} parent=0 // pred_check_branch
    %17 = sbr.rel (0) target = $region17
  $region16: #{fused_double_conv_transpose_tanh.1} parent=0 // pred_region
    _
  $region17: #{fused_double_conv_transpose_tanh.1} parent=0 // pred_fallthru
    _
  // Predicated region
  $region18: #{fused_double_conv_transpose_tanh.1} parent=0 // pred_check
    _
  $region19: #{fused_double_conv_transpose_tanh.1} parent=0 // pred_check_branch
    %19 = sbr.rel (0) target = $region21
  $region20: #{fused_double_conv_transpose_tanh.1} parent=0 // pred_region
    _
  $region21: #{fused_double_conv_transpose_tanh.1} parent=0 // pred_fallthru
    _
  %v20 = vld [vmem:[%s1] sm:$0x1]
  %s21 = scalar_lea.vmem %s1, 1
  %v22 = vld [vmem:[%s21] sm:$0x1]
  %s23 = scalar_lea.vmem %s1, 2
  %v24 = vld [vmem:[%s23] sm:$0x1]
  %s25 = scalar_lea.vmem %s1, 3
  %v26 = vld [vmem:[%s25] sm:$0x1]
  %s27 = scalar_lea.vmem %s1, 4
  %v28 = vld [vmem:[%s27] sm:$0x1]
  %s29 = scalar_lea.vmem %s1, 5
  %v30 = vld [vmem:[%s29] sm:$0x1]
  %s31 = scalar_lea.vmem %s1, 6
  %v32 = vld [vmem:[%s31] sm:$0x1]
  %s33 = scalar_lea.vmem %s1, 7
  %v34 = vld [vmem:[%s33] sm:$0x1]
  %s35 = scalar_lea.vmem %s1, 8
  %v36 = vld [vmem:[%s35] sm:$0x1]
  %s37 = scalar_lea.vmem %s1, 9
  %v38 = vld [vmem:[%s37] sm:$0x1]
  %s39 = scalar_lea.vmem %s1, 10
  %v40 = vld [vmem:[%s39] sm:$0x1]
  %s41 = scalar_lea.vmem %s1, 11
  %v42 = vld [vmem:[%s41] sm:$0x1]
  %v43 = vld [vmem:[%s3] sm:$0x1]
  %s44 = scalar_lea.vmem %s3, 1
  %v45 = vld [vmem:[%s44] sm:$0x1]
  %s46 = scalar_lea.vmem %s3, 2
  %v47 = vld [vmem:[%s46] sm:$0x1]
  %s48 = scalar_lea.vmem %s3, 3
  %v49 = vld [vmem:[%s48] sm:$0x1]
  %s50 = scalar_lea.vmem %s3, 4
  %v51 = vld [vmem:[%s50] sm:$0x1]
  %s52 = scalar_lea.vmem %s3, 5
  %v53 = vld [vmem:[%s52] sm:$0x1]
  %s54 = scalar_lea.vmem %s3, 6
  %v55 = vld [vmem:[%s54] sm:$0x1]
  %s56 = scalar_lea.vmem %s3, 7
  %v57 = vld [vmem:[%s56] sm:$0x1]
  %v58 = vld [vmem:[%s2] sm:$0x1]
  %v59 = vld [vmem:[%s4] sm:$0x1]
  %v60 = vld [vmem:[%s0] sm:$0xff]
  %v61 = vld [vmem:[%s0 + $0x8] sm:$0xff]
  %v62 = vld [vmem:[%s0 + $0x10] sm:$0x1]
  %66 = vrot.lane.b32.xlu0 %v60, 17
  %v67 = vpop.permute.xlu0 %66
  %68 = vrot.lane.b32.xlu0 %v61, 17
  %v69 = vpop.permute.xlu0 %68
  %70 = vrot.lane.b32.xlu0 %v62, 17
  %v71 = vpop.permute.xlu0 %70
  %vm75 = vcmask 138240
  %v76 = vsel %vm75, %v60, %v67
  %v77 = vsel %vm75, %v61, %v69
  %v78 = vsel %vm75, %v62, %v71
  %v80 = vlaneseq
  %v81 = vshrl.u32 %v80, 7
  %v82 = vsub.s32 0, %v81
  %v83 = vrot.slane %v20, %v82
  %v85 = vmul.f32 %v76, %v83
  %v86 = vmul.f32 %v77, %v83
  %v87 = vmul.f32 %v78, %v83
  %v88 = vadd.f32 %v85, 0.0
  %v89 = vadd.f32 %v86, 0.0
  %v90 = vadd.f32 %v87, 0.0
  %91 = vrot.lane.b32.xlu0 %v60, 127
  %v92 = vpop.permute.xlu0 %91
  %93 = vrot.lane.b32.xlu0 %v61, 127
  %v94 = vpop.permute.xlu0 %93
  %95 = vrot.lane.b32.xlu0 %v62, 127
  %v96 = vpop.permute.xlu0 %95
  %100 = vrot.lane.b32.xlu0 %v60, 16
  %v101 = vpop.permute.xlu0 %100
  %102 = vrot.lane.b32.xlu0 %v61, 16
  %v103 = vpop.permute.xlu0 %102
  %104 = vrot.lane.b32.xlu0 %v62, 16
  %v105 = vpop.permute.xlu0 %104
  %v109 = vsel %vm75, %v92, %v101
  %v110 = vsel %vm75, %v94, %v103
  %v111 = vsel %vm75, %v96, %v105
  %v113 = vlaneseq
  %v114 = vshrl.u32 %v113, 7
  %v115 = vsub.s32 0, %v114
  %v116 = vrot.slane %v22, %v115
  %v118 = vmul.f32 %v109, %v116
  %v119 = vmul.f32 %v110, %v116
  %v120 = vmul.f32 %v111, %v116
  %v121 = vadd.f32 %v88, %v118
  %v122 = vadd.f32 %v89, %v119
  %v123 = vadd.f32 %v90, %v120
  %v124 = vld [vmem:[%s0 + $0x1] sm:$0xff]
  %v125 = vld [vmem:[%s0 + $0x9] sm:$0xff]
  %v126 = vld [vmem:[%s0 + $0x11] sm:$0x1]
  %130 = vrot.lane.b32.xlu0 %v124, 17
  %v131 = vpop.permute.xlu0 %130
  %132 = vrot.lane.b32.xlu0 %v125, 17
  %v133 = vpop.permute.xlu0 %132
  %134 = vrot.lane.b32.xlu0 %v126, 17
  %v135 = vpop.permute.xlu0 %134
  %v139 = vsel %vm75, %v124, %v131
  %v140 = vsel %vm75, %v125, %v133
  %v141 = vsel %vm75, %v126, %v135
  %v143 = vlaneseq
  %v144 = vshrl.u32 %v143, 7
  %v145 = vsub.s32 0, %v144
  %v146 = vrot.slane %v24, %v145
  %v148 = vmul.f32 %v139, %v146
  %v149 = vmul.f32 %v140, %v146
  %v150 = vmul.f32 %v141, %v146
  %v151 = vadd.f32 %v121, %v148
  %v152 = vadd.f32 %v122, %v149
  %v153 = vadd.f32 %v123, %v150
  %154 = vrot.lane.b32.xlu0 %v124, 127
  %v155 = vpop.permute.xlu0 %154
  %156 = vrot.lane.b32.xlu0 %v125, 127
  %v157 = vpop.permute.xlu0 %156
  %158 = vrot.lane.b32.xlu0 %v126, 127
  %v159 = vpop.permute.xlu0 %158
  %163 = vrot.lane.b32.xlu0 %v124, 16
  %v164 = vpop.permute.xlu0 %163
  %165 = vrot.lane.b32.xlu0 %v125, 16
  %v166 = vpop.permute.xlu0 %165
  %167 = vrot.lane.b32.xlu0 %v126, 16
  %v168 = vpop.permute.xlu0 %167
  %v172 = vsel %vm75, %v155, %v164
  %v173 = vsel %vm75, %v157, %v166
  %v174 = vsel %vm75, %v159, %v168
  %v176 = vlaneseq
  %v177 = vshrl.u32 %v176, 7
  %v178 = vsub.s32 0, %v177
  %v179 = vrot.slane %v26, %v178
  %v181 = vmul.f32 %v172, %v179
  %v182 = vmul.f32 %v173, %v179
  %v183 = vmul.f32 %v174, %v179
  %v184 = vadd.f32 %v151, %v181
  %v185 = vadd.f32 %v152, %v182
  %v186 = vadd.f32 %v153, %v183
  %s187 = scalar_lea.vmem %s0, 24
  %v188 = vld [vmem:[%s187] sm:$0xff]
  %v189 = vld [vmem:[%s187 + $0x8] sm:$0xff]
  %v190 = vld [vmem:[%s187 + $0x10] sm:$0x1]
  %194 = vrot.lane.b32.xlu0 %v188, 17
  %v195 = vpop.permute.xlu0 %194
  %196 = vrot.lane.b32.xlu0 %v189, 17
  %v197 = vpop.permute.xlu0 %196
  %198 = vrot.lane.b32.xlu0 %v190, 17
  %v199 = vpop.permute.xlu0 %198
  %v203 = vsel %vm75, %v188, %v195
  %v204 = vsel %vm75, %v189, %v197
  %v205 = vsel %vm75, %v190, %v199
  %v207 = vlaneseq
  %v208 = vshrl.u32 %v207, 7
  %v209 = vsub.s32 0, %v208
  %v210 = vrot.slane %v28, %v209
  %v212 = vmul.f32 %v203, %v210
  %v213 = vmul.f32 %v204, %v210
  %v214 = vmul.f32 %v205, %v210
  %v215 = vadd.f32 %v184, %v212
  %v216 = vadd.f32 %v185, %v213
  %v217 = vadd.f32 %v186, %v214
  %218 = vrot.lane.b32.xlu0 %v188, 127
  %v219 = vpop.permute.xlu0 %218
  %220 = vrot.lane.b32.xlu0 %v189, 127
  %v221 = vpop.permute.xlu0 %220
  %222 = vrot.lane.b32.xlu0 %v190, 127
  %v223 = vpop.permute.xlu0 %222
  %227 = vrot.lane.b32.xlu0 %v188, 16
  %v228 = vpop.permute.xlu0 %227
  %229 = vrot.lane.b32.xlu0 %v189, 16
  %v230 = vpop.permute.xlu0 %229
  %231 = vrot.lane.b32.xlu0 %v190, 16
  %v232 = vpop.permute.xlu0 %231
  %v236 = vsel %vm75, %v219, %v228
  %v237 = vsel %vm75, %v221, %v230
  %v238 = vsel %vm75, %v223, %v232
  %v240 = vlaneseq
  %v241 = vshrl.u32 %v240, 7
  %v242 = vsub.s32 0, %v241
  %v243 = vrot.slane %v30, %v242
  %v245 = vmul.f32 %v236, %v243
  %v246 = vmul.f32 %v237, %v243
  %v247 = vmul.f32 %v238, %v243
  %v248 = vadd.f32 %v215, %v245
  %v249 = vadd.f32 %v216, %v246
  %v250 = vadd.f32 %v217, %v247
  %v251 = vld [vmem:[%s187 + $0x1] sm:$0xff]
  %v252 = vld [vmem:[%s187 + $0x9] sm:$0xff]
  %v253 = vld [vmem:[%s187 + $0x11] sm:$0x1]
  %257 = vrot.lane.b32.xlu0 %v251, 17
  %v258 = vpop.permute.xlu0 %257
  %259 = vrot.lane.b32.xlu0 %v252, 17
  %v260 = vpop.permute.xlu0 %259
  %261 = vrot.lane.b32.xlu0 %v253, 17
  %v262 = vpop.permute.xlu0 %261
  %v266 = vsel %vm75, %v251, %v258
  %v267 = vsel %vm75, %v252, %v260
  %v268 = vsel %vm75, %v253, %v262
  %v270 = vlaneseq
  %v271 = vshrl.u32 %v270, 7
  %v272 = vsub.s32 0, %v271
  %v273 = vrot.slane %v32, %v272
  %v275 = vmul.f32 %v266, %v273
  %v276 = vmul.f32 %v267, %v273
  %v277 = vmul.f32 %v268, %v273
  %v278 = vadd.f32 %v248, %v275
  %v279 = vadd.f32 %v249, %v276
  %v280 = vadd.f32 %v250, %v277
  %281 = vrot.lane.b32.xlu0 %v251, 127
  %v282 = vpop.permute.xlu0 %281
  %283 = vrot.lane.b32.xlu0 %v252, 127
  %v284 = vpop.permute.xlu0 %283
  %285 = vrot.lane.b32.xlu0 %v253, 127
  %v286 = vpop.permute.xlu0 %285
  %290 = vrot.lane.b32.xlu0 %v251, 16
  %v291 = vpop.permute.xlu0 %290
  %292 = vrot.lane.b32.xlu0 %v252, 16
  %v293 = vpop.permute.xlu0 %292
  %294 = vrot.lane.b32.xlu0 %v253, 16
  %v295 = vpop.permute.xlu0 %294
  %v299 = vsel %vm75, %v282, %v291
  %v300 = vsel %vm75, %v284, %v293
  %v301 = vsel %vm75, %v286, %v295
  %v303 = vlaneseq
  %v304 = vshrl.u32 %v303, 7
  %v305 = vsub.s32 0, %v304
  %v306 = vrot.slane %v34, %v305
  %v308 = vmul.f32 %v299, %v306
  %v309 = vmul.f32 %v300, %v306
  %v310 = vmul.f32 %v301, %v306
  %v311 = vadd.f32 %v278, %v308
  %v312 = vadd.f32 %v279, %v309
  %v313 = vadd.f32 %v280, %v310
  %s314 = scalar_lea.vmem %s0, 48
  %v315 = vld [vmem:[%s314] sm:$0xff]
  %v316 = vld [vmem:[%s314 + $0x8] sm:$0xff]
  %v317 = vld [vmem:[%s314 + $0x10] sm:$0x1]
  %321 = vrot.lane.b32.xlu0 %v315, 17
  %v322 = vpop.permute.xlu0 %321
  %323 = vrot.lane.b32.xlu0 %v316, 17
  %v324 = vpop.permute.xlu0 %323
  %325 = vrot.lane.b32.xlu0 %v317, 17
  %v326 = vpop.permute.xlu0 %325
  %v330 = vsel %vm75, %v315, %v322
  %v331 = vsel %vm75, %v316, %v324
  %v332 = vsel %vm75, %v317, %v326
  %v334 = vlaneseq
  %v335 = vshrl.u32 %v334, 7
  %v336 = vsub.s32 0, %v335
  %v337 = vrot.slane %v36, %v336
  %v339 = vmul.f32 %v330, %v337
  %v340 = vmul.f32 %v331, %v337
  %v341 = vmul.f32 %v332, %v337
  %v342 = vadd.f32 %v311, %v339
  %v343 = vadd.f32 %v312, %v340
  %v344 = vadd.f32 %v313, %v341
  %345 = vrot.lane.b32.xlu0 %v315, 127
  %v346 = vpop.permute.xlu0 %345
  %347 = vrot.lane.b32.xlu0 %v316, 127
  %v348 = vpop.permute.xlu0 %347
  %349 = vrot.lane.b32.xlu0 %v317, 127
  %v350 = vpop.permute.xlu0 %349
  %354 = vrot.lane.b32.xlu0 %v315, 16
  %v355 = vpop.permute.xlu0 %354
  %356 = vrot.lane.b32.xlu0 %v316, 16
  %v357 = vpop.permute.xlu0 %356
  %358 = vrot.lane.b32.xlu0 %v317, 16
  %v359 = vpop.permute.xlu0 %358
  %v363 = vsel %vm75, %v346, %v355
  %v364 = vsel %vm75, %v348, %v357
  %v365 = vsel %vm75, %v350, %v359
  %v367 = vlaneseq
  %v368 = vshrl.u32 %v367, 7
  %v369 = vsub.s32 0, %v368
  %v370 = vrot.slane %v38, %v369
  %v372 = vmul.f32 %v363, %v370
  %v373 = vmul.f32 %v364, %v370
  %v374 = vmul.f32 %v365, %v370
  %v375 = vadd.f32 %v342, %v372
  %v376 = vadd.f32 %v343, %v373
  %v377 = vadd.f32 %v344, %v374
  %v378 = vld [vmem:[%s314 + $0x1] sm:$0xff]
  %v379 = vld [vmem:[%s314 + $0x9] sm:$0xff]
  %v380 = vld [vmem:[%s314 + $0x11] sm:$0x1]
  %384 = vrot.lane.b32.xlu0 %v378, 17
  %v385 = vpop.permute.xlu0 %384
  %386 = vrot.lane.b32.xlu0 %v379, 17
  %v387 = vpop.permute.xlu0 %386
  %388 = vrot.lane.b32.xlu0 %v380, 17
  %v389 = vpop.permute.xlu0 %388
  %v393 = vsel %vm75, %v378, %v385
  %v394 = vsel %vm75, %v379, %v387
  %v395 = vsel %vm75, %v380, %v389
  %v397 = vlaneseq
  %v398 = vshrl.u32 %v397, 7
  %v399 = vsub.s32 0, %v398
  %v400 = vrot.slane %v40, %v399
  %v402 = vmul.f32 %v393, %v400
  %v403 = vmul.f32 %v394, %v400
  %v404 = vmul.f32 %v395, %v400
  %v405 = vadd.f32 %v375, %v402
  %v406 = vadd.f32 %v376, %v403
  %v407 = vadd.f32 %v377, %v404
  %408 = vrot.lane.b32.xlu0 %v378, 127
  %v409 = vpop.permute.xlu0 %408
  %410 = vrot.lane.b32.xlu0 %v379, 127
  %v411 = vpop.permute.xlu0 %410
  %412 = vrot.lane.b32.xlu0 %v380, 127
  %v413 = vpop.permute.xlu0 %412
  %417 = vrot.lane.b32.xlu0 %v378, 16
  %v418 = vpop.permute.xlu0 %417
  %419 = vrot.lane.b32.xlu0 %v379, 16
  %v420 = vpop.permute.xlu0 %419
  %421 = vrot.lane.b32.xlu0 %v380, 16
  %v422 = vpop.permute.xlu0 %421
  %v426 = vsel %vm75, %v409, %v418
  %v427 = vsel %vm75, %v411, %v420
  %v428 = vsel %vm75, %v413, %v422
  %v430 = vlaneseq
  %v431 = vshrl.u32 %v430, 7
  %v432 = vsub.s32 0, %v431
  %v433 = vrot.slane %v42, %v432
  %v435 = vmul.f32 %v426, %v433
  %v436 = vmul.f32 %v427, %v433
  %v437 = vmul.f32 %v428, %v433
  %v438 = vadd.f32 %v405, %v435
  %v439 = vadd.f32 %v406, %v436
  %v440 = vadd.f32 %v407, %v437
  %v442 = vlaneseq
  %v443 = vshrl.u32 %v442, 7
  %v444 = vsub.s32 0, %v443
  %v445 = vrot.slane %v58, %v444
  %v447 = vadd.f32 %v438, %v445
  %v448 = vadd.f32 %v439, %v445
  %v449 = vadd.f32 %v440, %v445
  %453 = vrot.lane.b32.xlu0 %v447, 1
  %v454 = vpop.permute.xlu0 %453
  %455 = vrot.lane.b32.xlu0 %v448, 1
  %v456 = vpop.permute.xlu0 %455
  %457 = vrot.lane.b32.xlu0 %v449, 1
  %v458 = vpop.permute.xlu0 %457
  %vm462 = vcmask 7168
  %v463 = vsel %vm462, 0.0, %v454
  %v464 = vsel %vm462, 0.0, %v456
  %v465 = vsel %vm462, 0.0, %v458
  %v466 = vsel %vm75, %v447, 0.0
  %v467 = vsel %vm75, %v448, 0.0
  %v468 = vsel %vm75, %v449, 0.0
  %vm472 = vcmask 1040384
  %v473 = vrot.slane %v463, 7
  %v474 = vrot.slane %v464, 7
  %v475 = vsel %vm472, %v473, %v474
  %v476 = vrot.slane %v465, 7
  %v477 = vsel %vm472, %v474, %v476
  %v481 = vsel %vm472, 0.0, %v473
  %483 = vrot.lane.b32.xlu0 %v481, 18
  %v484 = vpop.permute.xlu0 %483
  %485 = vrot.lane.b32.xlu0 %v475, 18
  %v486 = vpop.permute.xlu0 %485
  %487 = vrot.lane.b32.xlu0 %v477, 18
  %v488 = vpop.permute.xlu0 %487
  %492 = vrot.lane.b32.xlu0 %v481, 36
  %v493 = vpop.permute.xlu0 %492
  %494 = vrot.lane.b32.xlu0 %v475, 36
  %v495 = vpop.permute.xlu0 %494
  %496 = vrot.lane.b32.xlu0 %v477, 36
  %v497 = vpop.permute.xlu0 %496
  %501 = vrot.lane.b32.xlu0 %v481, 54
  %v502 = vpop.permute.xlu0 %501
  %503 = vrot.lane.b32.xlu0 %v475, 54
  %v504 = vpop.permute.xlu0 %503
  %505 = vrot.lane.b32.xlu0 %v477, 54
  %v506 = vpop.permute.xlu0 %505
  %510 = vrot.lane.b32.xlu0 %v481, 72
  %v511 = vpop.permute.xlu0 %510
  %512 = vrot.lane.b32.xlu0 %v475, 72
  %v513 = vpop.permute.xlu0 %512
  %514 = vrot.lane.b32.xlu0 %v477, 72
  %v515 = vpop.permute.xlu0 %514
  %vm519 = vcmask 146432
  %v520 = vsel %vm519, %v481, %v484
  %v521 = vsel %vm519, %v475, %v486
  %v522 = vsel %vm519, %v477, %v488
  %vm523 = vcmask 293888
  %v524 = vsel %vm523, %v520, %v493
  %v525 = vsel %vm523, %v521, %v495
  %v526 = vsel %vm523, %v522, %v497
  %vm527 = vcmask 441344
  %v528 = vsel %vm527, %v524, %v502
  %v529 = vsel %vm527, %v525, %v504
  %v530 = vsel %vm527, %v526, %v506
  %vm531 = vcmask 588800
  %v532 = vsel %vm531, %v528, %v511
  %v533 = vsel %vm531, %v529, %v513
  %v534 = vsel %vm531, %v530, %v515
  %v536 = vlaneseq
  %v537 = vshrl.u32 %v536, 7
  %v538 = vsub.s32 0, %v537
  %v539 = vrot.slane %v43, %v538
  %v541 = vmul.f32 %v532, %v539
  %v542 = vmul.f32 %v533, %v539
  %v543 = vmul.f32 %v534, %v539
  %v544 = vadd.f32 %v541, 0.0
  %v545 = vadd.f32 %v542, 0.0
  %v546 = vadd.f32 %v543, 0.0
  %v550 = vrot.slane %v466, 7
  %v551 = vrot.slane %v467, 7
  %v552 = vsel %vm472, %v550, %v551
  %v553 = vrot.slane %v468, 7
  %v554 = vsel %vm472, %v551, %v553
  %v558 = vsel %vm472, 0.0, %v550
  %560 = vrot.lane.b32.xlu0 %v558, 18
  %v561 = vpop.permute.xlu0 %560
  %562 = vrot.lane.b32.xlu0 %v552, 18
  %v563 = vpop.permute.xlu0 %562
  %564 = vrot.lane.b32.xlu0 %v554, 18
  %v565 = vpop.permute.xlu0 %564
  %569 = vrot.lane.b32.xlu0 %v558, 36
  %v570 = vpop.permute.xlu0 %569
  %571 = vrot.lane.b32.xlu0 %v552, 36
  %v572 = vpop.permute.xlu0 %571
  %573 = vrot.lane.b32.xlu0 %v554, 36
  %v574 = vpop.permute.xlu0 %573
  %578 = vrot.lane.b32.xlu0 %v558, 54
  %v579 = vpop.permute.xlu0 %578
  %580 = vrot.lane.b32.xlu0 %v552, 54
  %v581 = vpop.permute.xlu0 %580
  %582 = vrot.lane.b32.xlu0 %v554, 54
  %v583 = vpop.permute.xlu0 %582
  %587 = vrot.lane.b32.xlu0 %v558, 72
  %v588 = vpop.permute.xlu0 %587
  %589 = vrot.lane.b32.xlu0 %v552, 72
  %v590 = vpop.permute.xlu0 %589
  %591 = vrot.lane.b32.xlu0 %v554, 72
  %v592 = vpop.permute.xlu0 %591
  %v596 = vsel %vm519, %v558, %v561
  %v597 = vsel %vm519, %v552, %v563
  %v598 = vsel %vm519, %v554, %v565
  %v599 = vsel %vm523, %v596, %v570
  %v600 = vsel %vm523, %v597, %v572
  %v601 = vsel %vm523, %v598, %v574
  %v602 = vsel %vm527, %v599, %v579
  %v603 = vsel %vm527, %v600, %v581
  %v604 = vsel %vm527, %v601, %v583
  %v605 = vsel %vm531, %v602, %v588
  %v606 = vsel %vm531, %v603, %v590
  %v607 = vsel %vm531, %v604, %v592
  %v609 = vlaneseq
  %v610 = vshrl.u32 %v609, 7
  %v611 = vsub.s32 0, %v610
  %v612 = vrot.slane %v45, %v611
  %v614 = vmul.f32 %v605, %v612
  %v615 = vmul.f32 %v606, %v612
  %v616 = vmul.f32 %v607, %v612
  %v617 = vadd.f32 %v544, %v614
  %v618 = vadd.f32 %v545, %v615
  %v619 = vadd.f32 %v546, %v616
  %v620 = vsel %vm472, %v465, 0.0
  %622 = vrot.lane.b32.xlu0 %v463, 18
  %v623 = vpop.permute.xlu0 %622
  %624 = vrot.lane.b32.xlu0 %v464, 18
  %v625 = vpop.permute.xlu0 %624
  %626 = vrot.lane.b32.xlu0 %v620, 18
  %v627 = vpop.permute.xlu0 %626
  %631 = vrot.lane.b32.xlu0 %v463, 36
  %v632 = vpop.permute.xlu0 %631
  %633 = vrot.lane.b32.xlu0 %v464, 36
  %v634 = vpop.permute.xlu0 %633
  %635 = vrot.lane.b32.xlu0 %v620, 36
  %v636 = vpop.permute.xlu0 %635
  %640 = vrot.lane.b32.xlu0 %v463, 54
  %v641 = vpop.permute.xlu0 %640
  %642 = vrot.lane.b32.xlu0 %v464, 54
  %v643 = vpop.permute.xlu0 %642
  %644 = vrot.lane.b32.xlu0 %v620, 54
  %v645 = vpop.permute.xlu0 %644
  %649 = vrot.lane.b32.xlu0 %v463, 72
  %v650 = vpop.permute.xlu0 %649
  %651 = vrot.lane.b32.xlu0 %v464, 72
  %v652 = vpop.permute.xlu0 %651
  %653 = vrot.lane.b32.xlu0 %v620, 72
  %v654 = vpop.permute.xlu0 %653
  %v658 = vsel %vm519, %v463, %v623
  %v659 = vsel %vm519, %v464, %v625
  %v660 = vsel %vm519, %v620, %v627
  %v661 = vsel %vm523, %v658, %v632
  %v662 = vsel %vm523, %v659, %v634
  %v663 = vsel %vm523, %v660, %v636
  %v664 = vsel %vm527, %v661, %v641
  %v665 = vsel %vm527, %v662, %v643
  %v666 = vsel %vm527, %v663, %v645
  %v667 = vsel %vm531, %v664, %v650
  %v668 = vsel %vm531, %v665, %v652
  %v669 = vsel %vm531, %v666, %v654
  %v671 = vlaneseq
  %v672 = vshrl.u32 %v671, 7
  %v673 = vsub.s32 0, %v672
  %v674 = vrot.slane %v47, %v673
  %v676 = vmul.f32 %v667, %v674
  %v677 = vmul.f32 %v668, %v674
  %v678 = vmul.f32 %v669, %v674
  %v679 = vadd.f32 %v617, %v676
  %v680 = vadd.f32 %v618, %v677
  %v681 = vadd.f32 %v619, %v678
  %v682 = vsel %vm472, %v468, 0.0
  %684 = vrot.lane.b32.xlu0 %v466, 18
  %v685 = vpop.permute.xlu0 %684
  %686 = vrot.lane.b32.xlu0 %v467, 18
  %v687 = vpop.permute.xlu0 %686
  %688 = vrot.lane.b32.xlu0 %v682, 18
  %v689 = vpop.permute.xlu0 %688
  %693 = vrot.lane.b32.xlu0 %v466, 36
  %v694 = vpop.permute.xlu0 %693
  %695 = vrot.lane.b32.xlu0 %v467, 36
  %v696 = vpop.permute.xlu0 %695
  %697 = vrot.lane.b32.xlu0 %v682, 36
  %v698 = vpop.permute.xlu0 %697
  %702 = vrot.lane.b32.xlu0 %v466, 54
  %v703 = vpop.permute.xlu0 %702
  %704 = vrot.lane.b32.xlu0 %v467, 54
  %v705 = vpop.permute.xlu0 %704
  %706 = vrot.lane.b32.xlu0 %v682, 54
  %v707 = vpop.permute.xlu0 %706
  %711 = vrot.lane.b32.xlu0 %v466, 72
  %v712 = vpop.permute.xlu0 %711
  %713 = vrot.lane.b32.xlu0 %v467, 72
  %v714 = vpop.permute.xlu0 %713
  %715 = vrot.lane.b32.xlu0 %v682, 72
  %v716 = vpop.permute.xlu0 %715
  %v720 = vsel %vm519, %v466, %v685
  %v721 = vsel %vm519, %v467, %v687
  %v722 = vsel %vm519, %v682, %v689
  %v723 = vsel %vm523, %v720, %v694
  %v724 = vsel %vm523, %v721, %v696
  %v725 = vsel %vm523, %v722, %v698
  %v726 = vsel %vm527, %v723, %v703
  %v727 = vsel %vm527, %v724, %v705
  %v728 = vsel %vm527, %v725, %v707
  %v729 = vsel %vm531, %v726, %v712
  %v730 = vsel %vm531, %v727, %v714
  %v731 = vsel %vm531, %v728, %v716
  %v733 = vlaneseq
  %v734 = vshrl.u32 %v733, 7
  %v735 = vsub.s32 0, %v734
  %v736 = vrot.slane %v49, %v735
  %v738 = vmul.f32 %v729, %v736
  %v739 = vmul.f32 %v730, %v736
  %v740 = vmul.f32 %v731, %v736
  %v741 = vadd.f32 %v679, %v738
  %v742 = vadd.f32 %v680, %v739
  %v743 = vadd.f32 %v681, %v740
  %744 = vrot.lane.b32.xlu0 %v447, 112
  %v745 = vpop.permute.xlu0 %744
  %746 = vrot.lane.b32.xlu0 %v448, 112
  %v747 = vpop.permute.xlu0 %746
  %748 = vrot.lane.b32.xlu0 %v449, 112
  %v749 = vpop.permute.xlu0 %748
  %v753 = vsel %vm462, 0.0, %v745
  %v754 = vsel %vm462, 0.0, %v747
  %v755 = vsel %vm462, 0.0, %v749
  %756 = vrot.lane.b32.xlu0 %v447, 111
  %v757 = vpop.permute.xlu0 %756
  %758 = vrot.lane.b32.xlu0 %v448, 111
  %v759 = vpop.permute.xlu0 %758
  %760 = vrot.lane.b32.xlu0 %v449, 111
  %v761 = vpop.permute.xlu0 %760
  %v765 = vsel %vm75, %v757, 0.0
  %v766 = vsel %vm75, %v759, 0.0
  %v767 = vsel %vm75, %v761, 0.0
  %v771 = vrot.slane %v753, 7
  %v772 = vrot.slane %v754, 7
  %v773 = vsel %vm472, %v771, %v772
  %v774 = vrot.slane %v755, 7
  %v775 = vsel %vm472, %v772, %v774
  %v779 = vsel %vm472, 0.0, %v771
  %781 = vrot.lane.b32.xlu0 %v779, 18
  %v782 = vpop.permute.xlu0 %781
  %783 = vrot.lane.b32.xlu0 %v773, 18
  %v784 = vpop.permute.xlu0 %783
  %785 = vrot.lane.b32.xlu0 %v775, 18
  %v786 = vpop.permute.xlu0 %785
  %790 = vrot.lane.b32.xlu0 %v779, 36
  %v791 = vpop.permute.xlu0 %790
  %792 = vrot.lane.b32.xlu0 %v773, 36
  %v793 = vpop.permute.xlu0 %792
  %794 = vrot.lane.b32.xlu0 %v775, 36
  %v795 = vpop.permute.xlu0 %794
  %799 = vrot.lane.b32.xlu0 %v779, 54
  %v800 = vpop.permute.xlu0 %799
  %801 = vrot.lane.b32.xlu0 %v773, 54
  %v802 = vpop.permute.xlu0 %801
  %803 = vrot.lane.b32.xlu0 %v775, 54
  %v804 = vpop.permute.xlu0 %803
  %808 = vrot.lane.b32.xlu0 %v779, 72
  %v809 = vpop.permute.xlu0 %808
  %810 = vrot.lane.b32.xlu0 %v773, 72
  %v811 = vpop.permute.xlu0 %810
  %812 = vrot.lane.b32.xlu0 %v775, 72
  %v813 = vpop.permute.xlu0 %812
  %v817 = vsel %vm519, %v779, %v782
  %v818 = vsel %vm519, %v773, %v784
  %v819 = vsel %vm519, %v775, %v786
  %v820 = vsel %vm523, %v817, %v791
  %v821 = vsel %vm523, %v818, %v793
  %v822 = vsel %vm523, %v819, %v795
  %v823 = vsel %vm527, %v820, %v800
  %v824 = vsel %vm527, %v821, %v802
  %v825 = vsel %vm527, %v822, %v804
  %v826 = vsel %vm531, %v823, %v809
  %v827 = vsel %vm531, %v824, %v811
  %v828 = vsel %vm531, %v825, %v813
  %v830 = vlaneseq
  %v831 = vshrl.u32 %v830, 7
  %v832 = vsub.s32 0, %v831
  %v833 = vrot.slane %v51, %v832
  %v835 = vmul.f32 %v826, %v833
  %v836 = vmul.f32 %v827, %v833
  %v837 = vmul.f32 %v828, %v833
  %v838 = vadd.f32 %v741, %v835
  %v839 = vadd.f32 %v742, %v836
  %v840 = vadd.f32 %v743, %v837
  %v844 = vrot.slane %v765, 7
  %v845 = vrot.slane %v766, 7
  %v846 = vsel %vm472, %v844, %v845
  %v847 = vrot.slane %v767, 7
  %v848 = vsel %vm472, %v845, %v847
  %v852 = vsel %vm472, 0.0, %v844
  %854 = vrot.lane.b32.xlu0 %v852, 18
  %v855 = vpop.permute.xlu0 %854
  %856 = vrot.lane.b32.xlu0 %v846, 18
  %v857 = vpop.permute.xlu0 %856
  %858 = vrot.lane.b32.xlu0 %v848, 18
  %v859 = vpop.permute.xlu0 %858
  %863 = vrot.lane.b32.xlu0 %v852, 36
  %v864 = vpop.permute.xlu0 %863
  %865 = vrot.lane.b32.xlu0 %v846, 36
  %v866 = vpop.permute.xlu0 %865
  %867 = vrot.lane.b32.xlu0 %v848, 36
  %v868 = vpop.permute.xlu0 %867
  %872 = vrot.lane.b32.xlu0 %v852, 54
  %v873 = vpop.permute.xlu0 %872
  %874 = vrot.lane.b32.xlu0 %v846, 54
  %v875 = vpop.permute.xlu0 %874
  %876 = vrot.lane.b32.xlu0 %v848, 54
  %v877 = vpop.permute.xlu0 %876
  %881 = vrot.lane.b32.xlu0 %v852, 72
  %v882 = vpop.permute.xlu0 %881
  %883 = vrot.lane.b32.xlu0 %v846, 72
  %v884 = vpop.permute.xlu0 %883
  %885 = vrot.lane.b32.xlu0 %v848, 72
  %v886 = vpop.permute.xlu0 %885
  %v890 = vsel %vm519, %v852, %v855
  %v891 = vsel %vm519, %v846, %v857
  %v892 = vsel %vm519, %v848, %v859
  %v893 = vsel %vm523, %v890, %v864
  %v894 = vsel %vm523, %v891, %v866
  %v895 = vsel %vm523, %v892, %v868
  %v896 = vsel %vm527, %v893, %v873
  %v897 = vsel %vm527, %v894, %v875
  %v898 = vsel %vm527, %v895, %v877
  %v899 = vsel %vm531, %v896, %v882
  %v900 = vsel %vm531, %v897, %v884
  %v901 = vsel %vm531, %v898, %v886
  %v903 = vlaneseq
  %v904 = vshrl.u32 %v903, 7
  %v905 = vsub.s32 0, %v904
  %v906 = vrot.slane %v53, %v905
  %v908 = vmul.f32 %v899, %v906
  %v909 = vmul.f32 %v900, %v906
  %v910 = vmul.f32 %v901, %v906
  %v911 = vadd.f32 %v838, %v908
  %v912 = vadd.f32 %v839, %v909
  %v913 = vadd.f32 %v840, %v910
  %v914 = vsel %vm472, %v755, 0.0
  %916 = vrot.lane.b32.xlu0 %v753, 18
  %v917 = vpop.permute.xlu0 %916
  %918 = vrot.lane.b32.xlu0 %v754, 18
  %v919 = vpop.permute.xlu0 %918
  %920 = vrot.lane.b32.xlu0 %v914, 18
  %v921 = vpop.permute.xlu0 %920
  %925 = vrot.lane.b32.xlu0 %v753, 36
  %v926 = vpop.permute.xlu0 %925
  %927 = vrot.lane.b32.xlu0 %v754, 36
  %v928 = vpop.permute.xlu0 %927
  %929 = vrot.lane.b32.xlu0 %v914, 36
  %v930 = vpop.permute.xlu0 %929
  %934 = vrot.lane.b32.xlu0 %v753, 54
  %v935 = vpop.permute.xlu0 %934
  %936 = vrot.lane.b32.xlu0 %v754, 54
  %v937 = vpop.permute.xlu0 %936
  %938 = vrot.lane.b32.xlu0 %v914, 54
  %v939 = vpop.permute.xlu0 %938
  %943 = vrot.lane.b32.xlu0 %v753, 72
  %v944 = vpop.permute.xlu0 %943
  %945 = vrot.lane.b32.xlu0 %v754, 72
  %v946 = vpop.permute.xlu0 %945
  %947 = vrot.lane.b32.xlu0 %v914, 72
  %v948 = vpop.permute.xlu0 %947
  %v952 = vsel %vm519, %v753, %v917
  %v953 = vsel %vm519, %v754, %v919
  %v954 = vsel %vm519, %v914, %v921
  %v955 = vsel %vm523, %v952, %v926
  %v956 = vsel %vm523, %v953, %v928
  %v957 = vsel %vm523, %v954, %v930
  %v958 = vsel %vm527, %v955, %v935
  %v959 = vsel %vm527, %v956, %v937
  %v960 = vsel %vm527, %v957, %v939
  %v961 = vsel %vm531, %v958, %v944
  %v962 = vsel %vm531, %v959, %v946
  %v963 = vsel %vm531, %v960, %v948
  %v965 = vlaneseq
  %v966 = vshrl.u32 %v965, 7
  %v967 = vsub.s32 0, %v966
  %v968 = vrot.slane %v55, %v967
  %v970 = vmul.f32 %v961, %v968
  %v971 = vmul.f32 %v962, %v968
  %v972 = vmul.f32 %v963, %v968
  %v973 = vadd.f32 %v911, %v970
  %v974 = vadd.f32 %v912, %v971
  %v975 = vadd.f32 %v913, %v972
  %v976 = vsel %vm472, %v767, 0.0
  %978 = vrot.lane.b32.xlu0 %v765, 18
  %v979 = vpop.permute.xlu0 %978
  %980 = vrot.lane.b32.xlu0 %v766, 18
  %v981 = vpop.permute.xlu0 %980
  %982 = vrot.lane.b32.xlu0 %v976, 18
  %v983 = vpop.permute.xlu0 %982
  %987 = vrot.lane.b32.xlu0 %v765, 36
  %v988 = vpop.permute.xlu0 %987
  %989 = vrot.lane.b32.xlu0 %v766, 36
  %v990 = vpop.permute.xlu0 %989
  %991 = vrot.lane.b32.xlu0 %v976, 36
  %v992 = vpop.permute.xlu0 %991
  %996 = vrot.lane.b32.xlu0 %v765, 54
  %v997 = vpop.permute.xlu0 %996
  %998 = vrot.lane.b32.xlu0 %v766, 54
  %v999 = vpop.permute.xlu0 %998
  %1000 = vrot.lane.b32.xlu0 %v976, 54
  %v1001 = vpop.permute.xlu0 %1000
  %1005 = vrot.lane.b32.xlu0 %v765, 72
  %v1006 = vpop.permute.xlu0 %1005
  %1007 = vrot.lane.b32.xlu0 %v766, 72
  %v1008 = vpop.permute.xlu0 %1007
  %1009 = vrot.lane.b32.xlu0 %v976, 72
  %v1010 = vpop.permute.xlu0 %1009
  %v1014 = vsel %vm519, %v765, %v979
  %v1015 = vsel %vm519, %v766, %v981
  %v1016 = vsel %vm519, %v976, %v983
  %v1017 = vsel %vm523, %v1014, %v988
  %v1018 = vsel %vm523, %v1015, %v990
  %v1019 = vsel %vm523, %v1016, %v992
  %v1020 = vsel %vm527, %v1017, %v997
  %v1021 = vsel %vm527, %v1018, %v999
  %v1022 = vsel %vm527, %v1019, %v1001
  %v1023 = vsel %vm531, %v1020, %v1006
  %v1024 = vsel %vm531, %v1021, %v1008
  %v1025 = vsel %vm531, %v1022, %v1010
  %v1027 = vlaneseq
  %v1028 = vshrl.u32 %v1027, 7
  %v1029 = vsub.s32 0, %v1028
  %v1030 = vrot.slane %v57, %v1029
  %v1032 = vmul.f32 %v1023, %v1030
  %v1033 = vmul.f32 %v1024, %v1030
  %v1034 = vmul.f32 %v1025, %v1030
  %v1035 = vadd.f32 %v973, %v1032
  %v1036 = vadd.f32 %v974, %v1033
  %v1037 = vadd.f32 %v975, %v1034
  %v1039 = vlaneseq
  %v1040 = vshrl.u32 %v1039, 7
  %v1041 = vsub.s32 0, %v1040
  %v1042 = vrot.slane %v59, %v1041
  %v1044 = vadd.f32 %v1035, %v1042
  %v1045 = vadd.f32 %v1036, %v1042
  %v1046 = vadd.f32 %v1037, %v1042
  %v1047 = vtanh.pop %v1044
  %v1048 = vtanh.pop %v1045
  %v1049 = vtanh.pop %v1046
  %vm1050 = vcmask 736256
  %1051 = vst.msk [vmem:[%s5] sm:$0xff] %vm1050, %v1047
  %1052 = vst.msk [vmem:[%s5 + $0x8] sm:$0xff] %vm1050, %v1048
  %vm1053 = vcmask 730112
  %1054 = vst.msk [vmem:[%s5 + $0x10] sm:$0x3] %vm1053, %v1049
  %s1055 = scalar_lea.vmem %s0, 72
  %v1056 = vld [vmem:[%s1055] sm:$0xff]
  %v1057 = vld [vmem:[%s1055 + $0x8] sm:$0xff]
  %v1058 = vld [vmem:[%s1055 + $0x10] sm:$0x1]
  %1062 = vrot.lane.b32.xlu0 %v1056, 17
  %v1063 = vpop.permute.xlu0 %1062
  %1064 = vrot.lane.b32.xlu0 %v1057, 17
  %v1065 = vpop.permute.xlu0 %1064
  %1066 = vrot.lane.b32.xlu0 %v1058, 17
  %v1067 = vpop.permute.xlu0 %1066
  %v1071 = vsel %vm75, %v1056, %v1063
  %v1072 = vsel %vm75, %v1057, %v1065
  %v1073 = vsel %vm75, %v1058, %v1067
  %v1074 = vmul.f32 %v1071, %v83
  %v1075 = vmul.f32 %v1072, %v83
  %v1076 = vmul.f32 %v1073, %v83
  %v1077 = vadd.f32 %v1074, 0.0
  %v1078 = vadd.f32 %v1075, 0.0
  %v1079 = vadd.f32 %v1076, 0.0
  %1080 = vrot.lane.b32.xlu0 %v1056, 127
  %v1081 = vpop.permute.xlu0 %1080
  %1082 = vrot.lane.b32.xlu0 %v1057, 127
  %v1083 = vpop.permute.xlu0 %1082
  %1084 = vrot.lane.b32.xlu0 %v1058, 127
  %v1085 = vpop.permute.xlu0 %1084
  %1089 = vrot.lane.b32.xlu0 %v1056, 16
  %v1090 = vpop.permute.xlu0 %1089
  %1091 = vrot.lane.b32.xlu0 %v1057, 16
  %v1092 = vpop.permute.xlu0 %1091
  %1093 = vrot.lane.b32.xlu0 %v1058, 16
  %v1094 = vpop.permute.xlu0 %1093
  %v1098 = vsel %vm75, %v1081, %v1090
  %v1099 = vsel %vm75, %v1083, %v1092
  %v1100 = vsel %vm75, %v1085, %v1094
  %v1101 = vmul.f32 %v1098, %v116
  %v1102 = vmul.f32 %v1099, %v116
  %v1103 = vmul.f32 %v1100, %v116
  %v1104 = vadd.f32 %v1077, %v1101
  %v1105 = vadd.f32 %v1078, %v1102
  %v1106 = vadd.f32 %v1079, %v1103
  %v1107 = vld [vmem:[%s1055 + $0x1] sm:$0xff]
  %v1108 = vld [vmem:[%s1055 + $0x9] sm:$0xff]
  %v1109 = vld [vmem:[%s1055 + $0x11] sm:$0x1]
  %1113 = vrot.lane.b32.xlu0 %v1107, 17
  %v1114 = vpop.permute.xlu0 %1113
  %1115 = vrot.lane.b32.xlu0 %v1108, 17
  %v1116 = vpop.permute.xlu0 %1115
  %1117 = vrot.lane.b32.xlu0 %v1109, 17
  %v1118 = vpop.permute.xlu0 %1117
  %v1122 = vsel %vm75, %v1107, %v1114
  %v1123 = vsel %vm75, %v1108, %v1116
  %v1124 = vsel %vm75, %v1109, %v1118
  %v1125 = vmul.f32 %v1122, %v146
  %v1126 = vmul.f32 %v1123, %v146
  %v1127 = vmul.f32 %v1124, %v146
  %v1128 = vadd.f32 %v1104, %v1125
  %v1129 = vadd.f32 %v1105, %v1126
  %v1130 = vadd.f32 %v1106, %v1127
  %1131 = vrot.lane.b32.xlu0 %v1107, 127
  %v1132 = vpop.permute.xlu0 %1131
  %1133 = vrot.lane.b32.xlu0 %v1108, 127
  %v1134 = vpop.permute.xlu0 %1133
  %1135 = vrot.lane.b32.xlu0 %v1109, 127
  %v1136 = vpop.permute.xlu0 %1135
  %1140 = vrot.lane.b32.xlu0 %v1107, 16
  %v1141 = vpop.permute.xlu0 %1140
  %1142 = vrot.lane.b32.xlu0 %v1108, 16
  %v1143 = vpop.permute.xlu0 %1142
  %1144 = vrot.lane.b32.xlu0 %v1109, 16
  %v1145 = vpop.permute.xlu0 %1144
  %v1149 = vsel %vm75, %v1132, %v1141
  %v1150 = vsel %vm75, %v1134, %v1143
  %v1151 = vsel %vm75, %v1136, %v1145
  %v1152 = vmul.f32 %v1149, %v179
  %v1153 = vmul.f32 %v1150, %v179
  %v1154 = vmul.f32 %v1151, %v179
  %v1155 = vadd.f32 %v1128, %v1152
  %v1156 = vadd.f32 %v1129, %v1153
  %v1157 = vadd.f32 %v1130, %v1154
  %s1158 = scalar_lea.vmem %s0, 96
  %v1159 = vld [vmem:[%s1158] sm:$0xff]
  %v1160 = vld [vmem:[%s1158 + $0x8] sm:$0xff]
  %v1161 = vld [vmem:[%s1158 + $0x10] sm:$0x1]
  %1165 = vrot.lane.b32.xlu0 %v1159, 17
  %v1166 = vpop.permute.xlu0 %1165
  %1167 = vrot.lane.b32.xlu0 %v1160, 17
  %v1168 = vpop.permute.xlu0 %1167
  %1169 = vrot.lane.b32.xlu0 %v1161, 17
  %v1170 = vpop.permute.xlu0 %1169
  %v1174 = vsel %vm75, %v1159, %v1166
  %v1175 = vsel %vm75, %v1160, %v1168
  %v1176 = vsel %vm75, %v1161, %v1170
  %v1177 = vmul.f32 %v1174, %v210
  %v1178 = vmul.f32 %v1175, %v210
  %v1179 = vmul.f32 %v1176, %v210
  %v1180 = vadd.f32 %v1155, %v1177
  %v1181 = vadd.f32 %v1156, %v1178
  %v1182 = vadd.f32 %v1157, %v1179
  %1183 = vrot.lane.b32.xlu0 %v1159, 127
  %v1184 = vpop.permute.xlu0 %1183
  %1185 = vrot.lane.b32.xlu0 %v1160, 127
  %v1186 = vpop.permute.xlu0 %1185
  %1187 = vrot.lane.b32.xlu0 %v1161, 127
  %v1188 = vpop.permute.xlu0 %1187
  %1192 = vrot.lane.b32.xlu0 %v1159, 16
  %v1193 = vpop.permute.xlu0 %1192
  %1194 = vrot.lane.b32.xlu0 %v1160, 16
  %v1195 = vpop.permute.xlu0 %1194
  %1196 = vrot.lane.b32.xlu0 %v1161, 16
  %v1197 = vpop.permute.xlu0 %1196
  %v1201 = vsel %vm75, %v1184, %v1193
  %v1202 = vsel %vm75, %v1186, %v1195
  %v1203 = vsel %vm75, %v1188, %v1197
  %v1204 = vmul.f32 %v1201, %v243
  %v1205 = vmul.f32 %v1202, %v243
  %v1206 = vmul.f32 %v1203, %v243
  %v1207 = vadd.f32 %v1180, %v1204
  %v1208 = vadd.f32 %v1181, %v1205
  %v1209 = vadd.f32 %v1182, %v1206
  %v1210 = vld [vmem:[%s1158 + $0x1] sm:$0xff]
  %v1211 = vld [vmem:[%s1158 + $0x9] sm:$0xff]
  %v1212 = vld [vmem:[%s1158 + $0x11] sm:$0x1]
  %1216 = vrot.lane.b32.xlu0 %v1210, 17
  %v1217 = vpop.permute.xlu0 %1216
  %1218 = vrot.lane.b32.xlu0 %v1211, 17
  %v1219 = vpop.permute.xlu0 %1218
  %1220 = vrot.lane.b32.xlu0 %v1212, 17
  %v1221 = vpop.permute.xlu0 %1220
  %v1225 = vsel %vm75, %v1210, %v1217
  %v1226 = vsel %vm75, %v1211, %v1219
  %v1227 = vsel %vm75, %v1212, %v1221
  %v1228 = vmul.f32 %v1225, %v273
  %v1229 = vmul.f32 %v1226, %v273
  %v1230 = vmul.f32 %v1227, %v273
  %v1231 = vadd.f32 %v1207, %v1228
  %v1232 = vadd.f32 %v1208, %v1229
  %v1233 = vadd.f32 %v1209, %v1230
  %1234 = vrot.lane.b32.xlu0 %v1210, 127
  %v1235 = vpop.permute.xlu0 %1234
  %1236 = vrot.lane.b32.xlu0 %v1211, 127
  %v1237 = vpop.permute.xlu0 %1236
  %1238 = vrot.lane.b32.xlu0 %v1212, 127
  %v1239 = vpop.permute.xlu0 %1238
  %1243 = vrot.lane.b32.xlu0 %v1210, 16
  %v1244 = vpop.permute.xlu0 %1243
  %1245 = vrot.lane.b32.xlu0 %v1211, 16
  %v1246 = vpop.permute.xlu0 %1245
  %1247 = vrot.lane.b32.xlu0 %v1212, 16
  %v1248 = vpop.permute.xlu0 %1247
  %v1252 = vsel %vm75, %v1235, %v1244
  %v1253 = vsel %vm75, %v1237, %v1246
  %v1254 = vsel %vm75, %v1239, %v1248
  %v1255 = vmul.f32 %v1252, %v306
  %v1256 = vmul.f32 %v1253, %v306
  %v1257 = vmul.f32 %v1254, %v306
  %v1258 = vadd.f32 %v1231, %v1255
  %v1259 = vadd.f32 %v1232, %v1256
  %v1260 = vadd.f32 %v1233, %v1257
  %s1261 = scalar_lea.vmem %s0, 120
  %v1262 = vld [vmem:[%s1261] sm:$0xff]
  %v1263 = vld [vmem:[%s1261 + $0x8] sm:$0xff]
  %v1264 = vld [vmem:[%s1261 + $0x10] sm:$0x1]
  %1268 = vrot.lane.b32.xlu0 %v1262, 17
  %v1269 = vpop.permute.xlu0 %1268
  %1270 = vrot.lane.b32.xlu0 %v1263, 17
  %v1271 = vpop.permute.xlu0 %1270
  %1272 = vrot.lane.b32.xlu0 %v1264, 17
  %v1273 = vpop.permute.xlu0 %1272
  %v1277 = vsel %vm75, %v1262, %v1269
  %v1278 = vsel %vm75, %v1263, %v1271
  %v1279 = vsel %vm75, %v1264, %v1273
  %v1280 = vmul.f32 %v1277, %v337
  %v1281 = vmul.f32 %v1278, %v337
  %v1282 = vmul.f32 %v1279, %v337
  %v1283 = vadd.f32 %v1258, %v1280
  %v1284 = vadd.f32 %v1259, %v1281
  %v1285 = vadd.f32 %v1260, %v1282
  %1286 = vrot.lane.b32.xlu0 %v1262, 127
  %v1287 = vpop.permute.xlu0 %1286
  %1288 = vrot.lane.b32.xlu0 %v1263, 127
  %v1289 = vpop.permute.xlu0 %1288
  %1290 = vrot.lane.b32.xlu0 %v1264, 127
  %v1291 = vpop.permute.xlu0 %1290
  %1295 = vrot.lane.b32.xlu0 %v1262, 16
  %v1296 = vpop.permute.xlu0 %1295
  %1297 = vrot.lane.b32.xlu0 %v1263, 16
  %v1298 = vpop.permute.xlu0 %1297
  %1299 = vrot.lane.b32.xlu0 %v1264, 16
  %v1300 = vpop.permute.xlu0 %1299
  %v1304 = vsel %vm75, %v1287, %v1296
  %v1305 = vsel %vm75, %v1289, %v1298
  %v1306 = vsel %vm75, %v1291, %v1300
  %v1307 = vmul.f32 %v1304, %v370
  %v1308 = vmul.f32 %v1305, %v370
  %v1309 = vmul.f32 %v1306, %v370
  %v1310 = vadd.f32 %v1283, %v1307
  %v1311 = vadd.f32 %v1284, %v1308
  %v1312 = vadd.f32 %v1285, %v1309
  %v1313 = vld [vmem:[%s1261 + $0x1] sm:$0xff]
  %v1314 = vld [vmem:[%s1261 + $0x9] sm:$0xff]
  %v1315 = vld [vmem:[%s1261 + $0x11] sm:$0x1]
  %1319 = vrot.lane.b32.xlu0 %v1313, 17
  %v1320 = vpop.permute.xlu0 %1319
  %1321 = vrot.lane.b32.xlu0 %v1314, 17
  %v1322 = vpop.permute.xlu0 %1321
  %1323 = vrot.lane.b32.xlu0 %v1315, 17
  %v1324 = vpop.permute.xlu0 %1323
  %v1328 = vsel %vm75, %v1313, %v1320
  %v1329 = vsel %vm75, %v1314, %v1322
  %v1330 = vsel %vm75, %v1315, %v1324
  %v1331 = vmul.f32 %v1328, %v400
  %v1332 = vmul.f32 %v1329, %v400
  %v1333 = vmul.f32 %v1330, %v400
  %v1334 = vadd.f32 %v1310, %v1331
  %v1335 = vadd.f32 %v1311, %v1332
  %v1336 = vadd.f32 %v1312, %v1333
  %1337 = vrot.lane.b32.xlu0 %v1313, 127
  %v1338 = vpop.permute.xlu0 %1337
  %1339 = vrot.lane.b32.xlu0 %v1314, 127
  %v1340 = vpop.permute.xlu0 %1339
  %1341 = vrot.lane.b32.xlu0 %v1315, 127
  %v1342 = vpop.permute.xlu0 %1341
  %1346 = vrot.lane.b32.xlu0 %v1313, 16
  %v1347 = vpop.permute.xlu0 %1346
  %1348 = vrot.lane.b32.xlu0 %v1314, 16
  %v1349 = vpop.permute.xlu0 %1348
  %1350 = vrot.lane.b32.xlu0 %v1315, 16
  %v1351 = vpop.permute.xlu0 %1350
  %v1355 = vsel %vm75, %v1338, %v1347
  %v1356 = vsel %vm75, %v1340, %v1349
  %v1357 = vsel %vm75, %v1342, %v1351
  %v1358 = vmul.f32 %v1355, %v433
  %v1359 = vmul.f32 %v1356, %v433
  %v1360 = vmul.f32 %v1357, %v433
  %v1361 = vadd.f32 %v1334, %v1358
  %v1362 = vadd.f32 %v1335, %v1359
  %v1363 = vadd.f32 %v1336, %v1360
  %v1364 = vadd.f32 %v1361, %v445
  %v1365 = vadd.f32 %v1362, %v445
  %v1366 = vadd.f32 %v1363, %v445
  %1370 = vrot.lane.b32.xlu0 %v1364, 1
  %v1371 = vpop.permute.xlu0 %1370
  %1372 = vrot.lane.b32.xlu0 %v1365, 1
  %v1373 = vpop.permute.xlu0 %1372
  %1374 = vrot.lane.b32.xlu0 %v1366, 1
  %v1375 = vpop.permute.xlu0 %1374
  %v1379 = vsel %vm462, 0.0, %v1371
  %v1380 = vsel %vm462, 0.0, %v1373
  %v1381 = vsel %vm462, 0.0, %v1375
  %v1382 = vsel %vm75, %v1364, 0.0
  %v1383 = vsel %vm75, %v1365, 0.0
  %v1384 = vsel %vm75, %v1366, 0.0
  %v1388 = vrot.slane %v1379, 7
  %v1389 = vrot.slane %v1380, 7
  %v1390 = vsel %vm472, %v1388, %v1389
  %v1391 = vrot.slane %v1381, 7
  %v1392 = vsel %vm472, %v1389, %v1391
  %v1396 = vsel %vm472, 0.0, %v1388
  %1398 = vrot.lane.b32.xlu0 %v1396, 18
  %v1399 = vpop.permute.xlu0 %1398
  %1400 = vrot.lane.b32.xlu0 %v1390, 18
  %v1401 = vpop.permute.xlu0 %1400
  %1402 = vrot.lane.b32.xlu0 %v1392, 18
  %v1403 = vpop.permute.xlu0 %1402
  %1407 = vrot.lane.b32.xlu0 %v1396, 36
  %v1408 = vpop.permute.xlu0 %1407
  %1409 = vrot.lane.b32.xlu0 %v1390, 36
  %v1410 = vpop.permute.xlu0 %1409
  %1411 = vrot.lane.b32.xlu0 %v1392, 36
  %v1412 = vpop.permute.xlu0 %1411
  %1416 = vrot.lane.b32.xlu0 %v1396, 54
  %v1417 = vpop.permute.xlu0 %1416
  %1418 = vrot.lane.b32.xlu0 %v1390, 54
  %v1419 = vpop.permute.xlu0 %1418
  %1420 = vrot.lane.b32.xlu0 %v1392, 54
  %v1421 = vpop.permute.xlu0 %1420
  %1425 = vrot.lane.b32.xlu0 %v1396, 72
  %v1426 = vpop.permute.xlu0 %1425
  %1427 = vrot.lane.b32.xlu0 %v1390, 72
  %v1428 = vpop.permute.xlu0 %1427
  %1429 = vrot.lane.b32.xlu0 %v1392, 72
  %v1430 = vpop.permute.xlu0 %1429
  %v1434 = vsel %vm519, %v1396, %v1399
  %v1435 = vsel %vm519, %v1390, %v1401
  %v1436 = vsel %vm519, %v1392, %v1403
  %v1437 = vsel %vm523, %v1434, %v1408
  %v1438 = vsel %vm523, %v1435, %v1410
  %v1439 = vsel %vm523, %v1436, %v1412
  %v1440 = vsel %vm527, %v1437, %v1417
  %v1441 = vsel %vm527, %v1438, %v1419
  %v1442 = vsel %vm527, %v1439, %v1421
  %v1443 = vsel %vm531, %v1440, %v1426
  %v1444 = vsel %vm531, %v1441, %v1428
  %v1445 = vsel %vm531, %v1442, %v1430
  %v1446 = vmul.f32 %v1443, %v539
  %v1447 = vmul.f32 %v1444, %v539
  %v1448 = vmul.f32 %v1445, %v539
  %v1449 = vadd.f32 %v1446, 0.0
  %v1450 = vadd.f32 %v1447, 0.0
  %v1451 = vadd.f32 %v1448, 0.0
  %v1455 = vrot.slane %v1382, 7
  %v1456 = vrot.slane %v1383, 7
  %v1457 = vsel %vm472, %v1455, %v1456
  %v1458 = vrot.slane %v1384, 7
  %v1459 = vsel %vm472, %v1456, %v1458
  %v1463 = vsel %vm472, 0.0, %v1455
  %1465 = vrot.lane.b32.xlu0 %v1463, 18
  %v1466 = vpop.permute.xlu0 %1465
  %1467 = vrot.lane.b32.xlu0 %v1457, 18
  %v1468 = vpop.permute.xlu0 %1467
  %1469 = vrot.lane.b32.xlu0 %v1459, 18
  %v1470 = vpop.permute.xlu0 %1469
  %1474 = vrot.lane.b32.xlu0 %v1463, 36
  %v1475 = vpop.permute.xlu0 %1474
  %1476 = vrot.lane.b32.xlu0 %v1457, 36
  %v1477 = vpop.permute.xlu0 %1476
  %1478 = vrot.lane.b32.xlu0 %v1459, 36
  %v1479 = vpop.permute.xlu0 %1478
  %1483 = vrot.lane.b32.xlu0 %v1463, 54
  %v1484 = vpop.permute.xlu0 %1483
  %1485 = vrot.lane.b32.xlu0 %v1457, 54
  %v1486 = vpop.permute.xlu0 %1485
  %1487 = vrot.lane.b32.xlu0 %v1459, 54
  %v1488 = vpop.permute.xlu0 %1487
  %1492 = vrot.lane.b32.xlu0 %v1463, 72
  %v1493 = vpop.permute.xlu0 %1492
  %1494 = vrot.lane.b32.xlu0 %v1457, 72
  %v1495 = vpop.permute.xlu0 %1494
  %1496 = vrot.lane.b32.xlu0 %v1459, 72
  %v1497 = vpop.permute.xlu0 %1496
  %v1501 = vsel %vm519, %v1463, %v1466
  %v1502 = vsel %vm519, %v1457, %v1468
  %v1503 = vsel %vm519, %v1459, %v1470
  %v1504 = vsel %vm523, %v1501, %v1475
  %v1505 = vsel %vm523, %v1502, %v1477
  %v1506 = vsel %vm523, %v1503, %v1479
  %v1507 = vsel %vm527, %v1504, %v1484
  %v1508 = vsel %vm527, %v1505, %v1486
  %v1509 = vsel %vm527, %v1506, %v1488
  %v1510 = vsel %vm531, %v1507, %v1493
  %v1511 = vsel %vm531, %v1508, %v1495
  %v1512 = vsel %vm531, %v1509, %v1497
  %v1513 = vmul.f32 %v1510, %v612
  %v1514 = vmul.f32 %v1511, %v612
  %v1515 = vmul.f32 %v1512, %v612
  %v1516 = vadd.f32 %v1449, %v1513
  %v1517 = vadd.f32 %v1450, %v1514
  %v1518 = vadd.f32 %v1451, %v1515
  %v1519 = vsel %vm472, %v1381, 0.0
  %1521 = vrot.lane.b32.xlu0 %v1379, 18
  %v1522 = vpop.permute.xlu0 %1521
  %1523 = vrot.lane.b32.xlu0 %v1380, 18
  %v1524 = vpop.permute.xlu0 %1523
  %1525 = vrot.lane.b32.xlu0 %v1519, 18
  %v1526 = vpop.permute.xlu0 %1525
  %1530 = vrot.lane.b32.xlu0 %v1379, 36
  %v1531 = vpop.permute.xlu0 %1530
  %1532 = vrot.lane.b32.xlu0 %v1380, 36
  %v1533 = vpop.permute.xlu0 %1532
  %1534 = vrot.lane.b32.xlu0 %v1519, 36
  %v1535 = vpop.permute.xlu0 %1534
  %1539 = vrot.lane.b32.xlu0 %v1379, 54
  %v1540 = vpop.permute.xlu0 %1539
  %1541 = vrot.lane.b32.xlu0 %v1380, 54
  %v1542 = vpop.permute.xlu0 %1541
  %1543 = vrot.lane.b32.xlu0 %v1519, 54
  %v1544 = vpop.permute.xlu0 %1543
  %1548 = vrot.lane.b32.xlu0 %v1379, 72
  %v1549 = vpop.permute.xlu0 %1548
  %1550 = vrot.lane.b32.xlu0 %v1380, 72
  %v1551 = vpop.permute.xlu0 %1550
  %1552 = vrot.lane.b32.xlu0 %v1519, 72
  %v1553 = vpop.permute.xlu0 %1552
  %v1557 = vsel %vm519, %v1379, %v1522
  %v1558 = vsel %vm519, %v1380, %v1524
  %v1559 = vsel %vm519, %v1519, %v1526
  %v1560 = vsel %vm523, %v1557, %v1531
  %v1561 = vsel %vm523, %v1558, %v1533
  %v1562 = vsel %vm523, %v1559, %v1535
  %v1563 = vsel %vm527, %v1560, %v1540
  %v1564 = vsel %vm527, %v1561, %v1542
  %v1565 = vsel %vm527, %v1562, %v1544
  %v1566 = vsel %vm531, %v1563, %v1549
  %v1567 = vsel %vm531, %v1564, %v1551
  %v1568 = vsel %vm531, %v1565, %v1553
  %v1569 = vmul.f32 %v1566, %v674
  %v1570 = vmul.f32 %v1567, %v674
  %v1571 = vmul.f32 %v1568, %v674
  %v1572 = vadd.f32 %v1516, %v1569
  %v1573 = vadd.f32 %v1517, %v1570
  %v1574 = vadd.f32 %v1518, %v1571
  %v1575 = vsel %vm472, %v1384, 0.0
  %1577 = vrot.lane.b32.xlu0 %v1382, 18
  %v1578 = vpop.permute.xlu0 %1577
  %1579 = vrot.lane.b32.xlu0 %v1383, 18
  %v1580 = vpop.permute.xlu0 %1579
  %1581 = vrot.lane.b32.xlu0 %v1575, 18
  %v1582 = vpop.permute.xlu0 %1581
  %1586 = vrot.lane.b32.xlu0 %v1382, 36
  %v1587 = vpop.permute.xlu0 %1586
  %1588 = vrot.lane.b32.xlu0 %v1383, 36
  %v1589 = vpop.permute.xlu0 %1588
  %1590 = vrot.lane.b32.xlu0 %v1575, 36
  %v1591 = vpop.permute.xlu0 %1590
  %1595 = vrot.lane.b32.xlu0 %v1382, 54
  %v1596 = vpop.permute.xlu0 %1595
  %1597 = vrot.lane.b32.xlu0 %v1383, 54
  %v1598 = vpop.permute.xlu0 %1597
  %1599 = vrot.lane.b32.xlu0 %v1575, 54
  %v1600 = vpop.permute.xlu0 %1599
  %1604 = vrot.lane.b32.xlu0 %v1382, 72
  %v1605 = vpop.permute.xlu0 %1604
  %1606 = vrot.lane.b32.xlu0 %v1383, 72
  %v1607 = vpop.permute.xlu0 %1606
  %1608 = vrot.lane.b32.xlu0 %v1575, 72
  %v1609 = vpop.permute.xlu0 %1608
  %v1613 = vsel %vm519, %v1382, %v1578
  %v1614 = vsel %vm519, %v1383, %v1580
  %v1615 = vsel %vm519, %v1575, %v1582
  %v1616 = vsel %vm523, %v1613, %v1587
  %v1617 = vsel %vm523, %v1614, %v1589
  %v1618 = vsel %vm523, %v1615, %v1591
  %v1619 = vsel %vm527, %v1616, %v1596
  %v1620 = vsel %vm527, %v1617, %v1598
  %v1621 = vsel %vm527, %v1618, %v1600
  %v1622 = vsel %vm531, %v1619, %v1605
  %v1623 = vsel %vm531, %v1620, %v1607
  %v1624 = vsel %vm531, %v1621, %v1609
  %v1625 = vmul.f32 %v1622, %v736
  %v1626 = vmul.f32 %v1623, %v736
  %v1627 = vmul.f32 %v1624, %v736
  %v1628 = vadd.f32 %v1572, %v1625
  %v1629 = vadd.f32 %v1573, %v1626
  %v1630 = vadd.f32 %v1574, %v1627
  %1631 = vrot.lane.b32.xlu0 %v1364, 112
  %v1632 = vpop.permute.xlu0 %1631
  %1633 = vrot.lane.b32.xlu0 %v1365, 112
  %v1634 = vpop.permute.xlu0 %1633
  %1635 = vrot.lane.b32.xlu0 %v1366, 112
  %v1636 = vpop.permute.xlu0 %1635
  %v1640 = vsel %vm462, 0.0, %v1632
  %v1641 = vsel %vm462, 0.0, %v1634
  %v1642 = vsel %vm462, 0.0, %v1636
  %1643 = vrot.lane.b32.xlu0 %v1364, 111
  %v1644 = vpop.permute.xlu0 %1643
  %1645 = vrot.lane.b32.xlu0 %v1365, 111
  %v1646 = vpop.permute.xlu0 %1645
  %1647 = vrot.lane.b32.xlu0 %v1366, 111
  %v1648 = vpop.permute.xlu0 %1647
  %v1652 = vsel %vm75, %v1644, 0.0
  %v1653 = vsel %vm75, %v1646, 0.0
  %v1654 = vsel %vm75, %v1648, 0.0
  %v1658 = vrot.slane %v1640, 7
  %v1659 = vrot.slane %v1641, 7
  %v1660 = vsel %vm472, %v1658, %v1659
  %v1661 = vrot.slane %v1642, 7
  %v1662 = vsel %vm472, %v1659, %v1661
  %v1666 = vsel %vm472, 0.0, %v1658
  %1668 = vrot.lane.b32.xlu0 %v1666, 18
  %v1669 = vpop.permute.xlu0 %1668
  %1670 = vrot.lane.b32.xlu0 %v1660, 18
  %v1671 = vpop.permute.xlu0 %1670
  %1672 = vrot.lane.b32.xlu0 %v1662, 18
  %v1673 = vpop.permute.xlu0 %1672
  %1677 = vrot.lane.b32.xlu0 %v1666, 36
  %v1678 = vpop.permute.xlu0 %1677
  %1679 = vrot.lane.b32.xlu0 %v1660, 36
  %v1680 = vpop.permute.xlu0 %1679
  %1681 = vrot.lane.b32.xlu0 %v1662, 36
  %v1682 = vpop.permute.xlu0 %1681
  %1686 = vrot.lane.b32.xlu0 %v1666, 54
  %v1687 = vpop.permute.xlu0 %1686
  %1688 = vrot.lane.b32.xlu0 %v1660, 54
  %v1689 = vpop.permute.xlu0 %1688
  %1690 = vrot.lane.b32.xlu0 %v1662, 54
  %v1691 = vpop.permute.xlu0 %1690
  %1695 = vrot.lane.b32.xlu0 %v1666, 72
  %v1696 = vpop.permute.xlu0 %1695
  %1697 = vrot.lane.b32.xlu0 %v1660, 72
  %v1698 = vpop.permute.xlu0 %1697
  %1699 = vrot.lane.b32.xlu0 %v1662, 72
  %v1700 = vpop.permute.xlu0 %1699
  %v1704 = vsel %vm519, %v1666, %v1669
  %v1705 = vsel %vm519, %v1660, %v1671
  %v1706 = vsel %vm519, %v1662, %v1673
  %v1707 = vsel %vm523, %v1704, %v1678
  %v1708 = vsel %vm523, %v1705, %v1680
  %v1709 = vsel %vm523, %v1706, %v1682
  %v1710 = vsel %vm527, %v1707, %v1687
  %v1711 = vsel %vm527, %v1708, %v1689
  %v1712 = vsel %vm527, %v1709, %v1691
  %v1713 = vsel %vm531, %v1710, %v1696
  %v1714 = vsel %vm531, %v1711, %v1698
  %v1715 = vsel %vm531, %v1712, %v1700
  %v1716 = vmul.f32 %v1713, %v833
  %v1717 = vmul.f32 %v1714, %v833
  %v1718 = vmul.f32 %v1715, %v833
  %v1719 = vadd.f32 %v1628, %v1716
  %v1720 = vadd.f32 %v1629, %v1717
  %v1721 = vadd.f32 %v1630, %v1718
  %v1725 = vrot.slane %v1652, 7
  %v1726 = vrot.slane %v1653, 7
  %v1727 = vsel %vm472, %v1725, %v1726
  %v1728 = vrot.slane %v1654, 7
  %v1729 = vsel %vm472, %v1726, %v1728
  %v1733 = vsel %vm472, 0.0, %v1725
  %1735 = vrot.lane.b32.xlu0 %v1733, 18
  %v1736 = vpop.permute.xlu0 %1735
  %1737 = vrot.lane.b32.xlu0 %v1727, 18
  %v1738 = vpop.permute.xlu0 %1737
  %1739 = vrot.lane.b32.xlu0 %v1729, 18
  %v1740 = vpop.permute.xlu0 %1739
  %1744 = vrot.lane.b32.xlu0 %v1733, 36
  %v1745 = vpop.permute.xlu0 %1744
  %1746 = vrot.lane.b32.xlu0 %v1727, 36
  %v1747 = vpop.permute.xlu0 %1746
  %1748 = vrot.lane.b32.xlu0 %v1729, 36
  %v1749 = vpop.permute.xlu0 %1748
  %1753 = vrot.lane.b32.xlu0 %v1733, 54
  %v1754 = vpop.permute.xlu0 %1753
  %1755 = vrot.lane.b32.xlu0 %v1727, 54
  %v1756 = vpop.permute.xlu0 %1755
  %1757 = vrot.lane.b32.xlu0 %v1729, 54
  %v1758 = vpop.permute.xlu0 %1757
  %1762 = vrot.lane.b32.xlu0 %v1733, 72
  %v1763 = vpop.permute.xlu0 %1762
  %1764 = vrot.lane.b32.xlu0 %v1727, 72
  %v1765 = vpop.permute.xlu0 %1764
  %1766 = vrot.lane.b32.xlu0 %v1729, 72
  %v1767 = vpop.permute.xlu0 %1766
  %v1771 = vsel %vm519, %v1733, %v1736
  %v1772 = vsel %vm519, %v1727, %v1738
  %v1773 = vsel %vm519, %v1729, %v1740
  %v1774 = vsel %vm523, %v1771, %v1745
  %v1775 = vsel %vm523, %v1772, %v1747
  %v1776 = vsel %vm523, %v1773, %v1749
  %v1777 = vsel %vm527, %v1774, %v1754
  %v1778 = vsel %vm527, %v1775, %v1756
  %v1779 = vsel %vm527, %v1776, %v1758
  %v1780 = vsel %vm531, %v1777, %v1763
  %v1781 = vsel %vm531, %v1778, %v1765
  %v1782 = vsel %vm531, %v1779, %v1767
  %v1783 = vmul.f32 %v1780, %v906
  %v1784 = vmul.f32 %v1781, %v906
  %v1785 = vmul.f32 %v1782, %v906
  %v1786 = vadd.f32 %v1719, %v1783
  %v1787 = vadd.f32 %v1720, %v1784
  %v1788 = vadd.f32 %v1721, %v1785
  %v1789 = vsel %vm472, %v1642, 0.0
  %1791 = vrot.lane.b32.xlu0 %v1640, 18
  %v1792 = vpop.permute.xlu0 %1791
  %1793 = vrot.lane.b32.xlu0 %v1641, 18
  %v1794 = vpop.permute.xlu0 %1793
  %1795 = vrot.lane.b32.xlu0 %v1789, 18
  %v1796 = vpop.permute.xlu0 %1795
  %1800 = vrot.lane.b32.xlu0 %v1640, 36
  %v1801 = vpop.permute.xlu0 %1800
  %1802 = vrot.lane.b32.xlu0 %v1641, 36
  %v1803 = vpop.permute.xlu0 %1802
  %1804 = vrot.lane.b32.xlu0 %v1789, 36
  %v1805 = vpop.permute.xlu0 %1804
  %1809 = vrot.lane.b32.xlu0 %v1640, 54
  %v1810 = vpop.permute.xlu0 %1809
  %1811 = vrot.lane.b32.xlu0 %v1641, 54
  %v1812 = vpop.permute.xlu0 %1811
  %1813 = vrot.lane.b32.xlu0 %v1789, 54
  %v1814 = vpop.permute.xlu0 %1813
  %1818 = vrot.lane.b32.xlu0 %v1640, 72
  %v1819 = vpop.permute.xlu0 %1818
  %1820 = vrot.lane.b32.xlu0 %v1641, 72
  %v1821 = vpop.permute.xlu0 %1820
  %1822 = vrot.lane.b32.xlu0 %v1789, 72
  %v1823 = vpop.permute.xlu0 %1822
  %v1827 = vsel %vm519, %v1640, %v1792
  %v1828 = vsel %vm519, %v1641, %v1794
  %v1829 = vsel %vm519, %v1789, %v1796
  %v1830 = vsel %vm523, %v1827, %v1801
  %v1831 = vsel %vm523, %v1828, %v1803
  %v1832 = vsel %vm523, %v1829, %v1805
  %v1833 = vsel %vm527, %v1830, %v1810
  %v1834 = vsel %vm527, %v1831, %v1812
  %v1835 = vsel %vm527, %v1832, %v1814
  %v1836 = vsel %vm531, %v1833, %v1819
  %v1837 = vsel %vm531, %v1834, %v1821
  %v1838 = vsel %vm531, %v1835, %v1823
  %v1839 = vmul.f32 %v1836, %v968
  %v1840 = vmul.f32 %v1837, %v968
  %v1841 = vmul.f32 %v1838, %v968
  %v1842 = vadd.f32 %v1786, %v1839
  %v1843 = vadd.f32 %v1787, %v1840
  %v1844 = vadd.f32 %v1788, %v1841
  %v1845 = vsel %vm472, %v1654, 0.0
  %1847 = vrot.lane.b32.xlu0 %v1652, 18
  %v1848 = vpop.permute.xlu0 %1847
  %1849 = vrot.lane.b32.xlu0 %v1653, 18
  %v1850 = vpop.permute.xlu0 %1849
  %1851 = vrot.lane.b32.xlu0 %v1845, 18
  %v1852 = vpop.permute.xlu0 %1851
  %1856 = vrot.lane.b32.xlu0 %v1652, 36
  %v1857 = vpop.permute.xlu0 %1856
  %1858 = vrot.lane.b32.xlu0 %v1653, 36
  %v1859 = vpop.permute.xlu0 %1858
  %1860 = vrot.lane.b32.xlu0 %v1845, 36
  %v1861 = vpop.permute.xlu0 %1860
  %1865 = vrot.lane.b32.xlu0 %v1652, 54
  %v1866 = vpop.permute.xlu0 %1865
  %1867 = vrot.lane.b32.xlu0 %v1653, 54
  %v1868 = vpop.permute.xlu0 %1867
  %1869 = vrot.lane.b32.xlu0 %v1845, 54
  %v1870 = vpop.permute.xlu0 %1869
  %1874 = vrot.lane.b32.xlu0 %v1652, 72
  %v1875 = vpop.permute.xlu0 %1874
  %1876 = vrot.lane.b32.xlu0 %v1653, 72
  %v1877 = vpop.permute.xlu0 %1876
  %1878 = vrot.lane.b32.xlu0 %v1845, 72
  %v1879 = vpop.permute.xlu0 %1878
  %v1883 = vsel %vm519, %v1652, %v1848
  %v1884 = vsel %vm519, %v1653, %v1850
  %v1885 = vsel %vm519, %v1845, %v1852
  %v1886 = vsel %vm523, %v1883, %v1857
  %v1887 = vsel %vm523, %v1884, %v1859
  %v1888 = vsel %vm523, %v1885, %v1861
  %v1889 = vsel %vm527, %v1886, %v1866
  %v1890 = vsel %vm527, %v1887, %v1868
  %v1891 = vsel %vm527, %v1888, %v1870
  %v1892 = vsel %vm531, %v1889, %v1875
  %v1893 = vsel %vm531, %v1890, %v1877
  %v1894 = vsel %vm531, %v1891, %v1879
  %v1895 = vmul.f32 %v1892, %v1030
  %v1896 = vmul.f32 %v1893, %v1030
  %v1897 = vmul.f32 %v1894, %v1030
  %v1898 = vadd.f32 %v1842, %v1895
  %v1899 = vadd.f32 %v1843, %v1896
  %v1900 = vadd.f32 %v1844, %v1897
  %v1901 = vadd.f32 %v1898, %v1042
  %v1902 = vadd.f32 %v1899, %v1042
  %v1903 = vadd.f32 %v1900, %v1042
  %v1904 = vtanh.pop %v1901
  %v1905 = vtanh.pop %v1902
  %v1906 = vtanh.pop %v1903
  %s1907 = scalar_lea.vmem %s5, 24
  %1908 = vst.msk [vmem:[%s1907] sm:$0xff] %vm1050, %v1904
  %1909 = vst.msk [vmem:[%s1907 + $0x8] sm:$0xff] %vm1050, %v1905
  %1910 = vst.msk [vmem:[%s1907 + $0x10] sm:$0x3] %vm1053, %v1906
  // Predicated region
  $region22: #{fused_double_conv_transpose_tanh.1} parent=0 // pred_check
    _
  $region23: #{fused_double_conv_transpose_tanh.1} parent=0 // pred_check_branch
    %1912 = sbr.rel (0) target = $region25
  $region24: #{fused_double_conv_transpose_tanh.1} parent=0 // pred_region
    _
  $region25: #{fused_double_conv_transpose_tanh.1} parent=0 // pred_fallthru
    _
  // Predicated region
  $region26: #{fused_double_conv_transpose_tanh.1} parent=0 // pred_check
    _
  $region27: #{fused_double_conv_transpose_tanh.1} parent=0 // pred_check_branch
    %1914 = sbr.rel (0) target = $region29
  $region28: #{fused_double_conv_transpose_tanh.1} parent=0 // pred_region
    _
  $region29: #{fused_double_conv_transpose_tanh.1} parent=0 // pred_fallthru
    _

</llo_original>
